<compile_context>
chip_gen: v7x
topology: tpu7x:2x2x1
jax: 0.10.0
libtpu: 0.0.40
codegen_flags: <defaults>
</compile_context>

<pallas_src>
import jax
import jax.numpy as jnp
from jax.experimental import pallas as pl
from jax.experimental.pallas import tpu as pltpu

NEG_SLOPE = 0.01  # nn.LeakyReLU default negative_slope


def convblock_kernel(xcol_ref, w_ref, b_ref, out_ref):
    x = xcol_ref[...]          # (pool, TB, K)   bf16
    w = w_ref[...]             # (K, Cout)       bf16
    b = b_ref[...]             # (1, 1, Cout)    f32

    # Conv as MXU matmul with f32 accumulation:
    # (pool, TB, K) x (K, Cout) -> (pool, TB, Cout)
    y = jax.lax.dot_general(x, w, (((2,), (0,)), ((), ())),
                            preferred_element_type=jnp.float32)
    y = y + b
    # LeakyReLU
    y = jnp.where(y > 0, y, NEG_SLOPE * y)
    # AvgPool2d((1, pool)): mean over the leading (pool) axis -- VPU adds only.
    out_ref[...] = jnp.mean(y, axis=0).astype(out_ref.dtype)


def conv_block_pallas(x, weight, bias, stride, pool_kernel, *, tb_max=512):
    """x: (N, Cin, H, W) NCHW; weight: (Cout, Cin, k, k) OIHW; bias: (Cout,)."""
    N, Cin, H, W = x.shape
    Cout, _, kh, kw = weight.shape
    Ho = (H - kh) // stride + 1
    Wo = (W - kw) // stride + 1
    Wp = Wo // pool_kernel            # AvgPool2d default floor mode
    K = Cin * kh * kw
    R = N * Ho * Wp                   # pooled output rows

    # --- glue: im2col, feature order (cin, di, dj) matches weight.reshape(Cout, -1)
    # TODO(synk): fuse patch extraction into the kernel (manual DMA over raw x)
    # to avoid the ~k*k HBM amplification of materializing xcol.
    patches = []
    for di in range(kh):
        for dj in range(kw):
            patches.append(x[:, :, di:di + stride * Ho:stride,
                               dj:dj + stride * Wo:stride])      # (N, Cin, Ho, Wo)
    xc = jnp.stack(patches, axis=2)                              # (N, Cin, kh*kw, Ho, Wo)
    xc = xc.reshape(N, K, Ho, Wo).transpose(0, 2, 3, 1)          # (N, Ho, Wo, K)
    xc = xc[:, :, :Wp * pool_kernel, :]                          # drop floor-mode tail
    xc = xc.reshape(N, Ho, Wp, pool_kernel, K)
    xc = xc.transpose(3, 0, 1, 2, 4).reshape(pool_kernel, R, K)  # (pool, R, K)
    xc = xc.astype(jnp.bfloat16)

    w2 = weight.reshape(Cout, K).T.astype(jnp.bfloat16)          # (K, Cout)
    b3 = bias.reshape(1, 1, Cout).astype(jnp.float32)            # (1, 1, Cout)

    # Row-tile size: large, multiple of 8 (sublane) unless R itself is tiny.
    tb = min(tb_max, R)
    if R > 8:
        tb = max(8, (tb // 8) * 8)
    grid = (pl.cdiv(R, tb),)

    cost = pl.CostEstimate(
        flops=2 * pool_kernel * R * K * Cout,
        transcendentals=0,
        bytes_accessed=xc.size * 2 + w2.size * 2 + b3.size * 4 + R * Cout * 4,
    )

    out2d = pl.pallas_call(
        convblock_kernel,
        out_shape=jax.ShapeDtypeStruct((R, Cout), jnp.float32),
        grid=grid,
        in_specs=[
            pl.BlockSpec((pool_kernel, tb, K), lambda i: (0, i, 0)),  # streamed
            pl.BlockSpec((K, Cout), lambda i: (0, 0)),                # resident
            pl.BlockSpec((1, 1, Cout), lambda i: (0, 0, 0)),          # resident
        ],
        out_specs=pl.BlockSpec((tb, Cout), lambda i: (i, 0)),
        compiler_params=pltpu.CompilerParams(
            dimension_semantics=("parallel",)),
        cost_estimate=cost,
    )(xc, w2, b3)

    # (N*Ho*Wp, Cout) -> NCHW (N, Cout, Ho, Wp)
    return out2d.reshape(N, Ho, Wp, Cout).transpose(0, 3, 1, 2)


if __name__ == "__main__":
    key = jax.random.PRNGKey(0)
    kx, kw, kb = jax.random.split(key, 3)

    # Small shapes consistent with the module
    N, Cin, H, W = 2, 4, 16, 16
    Cout, k, s, pool = 8, 3, 1, 2

    x = jax.random.normal(kx, (N, Cin, H, W), dtype=jnp.float32)
    # Deterministic synthetic params (PyTorch-style uniform bound)
    fan_in = Cin * k * k
    bound = 1.0 / (fan_in ** 0.5)
    weight = jax.random.uniform(kw, (Cout, Cin, k, k), jnp.float32, -bound, bound)
    bias = jax.random.uniform(kb, (Cout,), jnp.float32, -bound, bound)

    out = conv_block_pallas(x, weight, bias, s, pool)
    out = jax.block_until_ready(out)

    # Pure-JAX f32 reference of the PyTorch forward for verification
    y = jax.lax.conv_general_dilated(
        x, weight, window_strides=(s, s), padding="VALID",
        dimension_numbers=("NCHW", "OIHW", "NCHW"))
    y = y + bias[None, :, None, None]
    y = jnp.where(y > 0, y, NEG_SLOPE * y)
    Wo_ref = y.shape[-1]
    Wp_ref = Wo_ref // pool
    y = y[..., :Wp_ref * pool].reshape(*y.shape[:-1], Wp_ref, pool).mean(-1)

    assert out.shape == y.shape, (out.shape, y.shape)
    # bf16 streamed operands + f32 accumulation -> slightly looser tolerance.
    assert jnp.allclose(out, y, atol=3e-2, rtol=3e-2), float(
        jnp.max(jnp.abs(out - y)))
    print("KERNEL_OK")
</pallas_src>

<mosaic_0001>
module attributes {stable_mosaic.version = 11 : i64} {
  func.func @convblock_kernel(%arg0: i32, %arg1: memref<2x192x36xbf16, #tpu.memory_space<vmem>>, %arg2: memref<36x8xbf16, #tpu.memory_space<vmem>>, %arg3: memref<1x1x8xf32, #tpu.memory_space<vmem>>, %arg4: memref<192x8xf32, #tpu.memory_space<vmem>>) attributes {dimension_semantics = [#tpu.dimension_semantics<parallel>], iteration_bounds = array<i64: 2>, scalar_prefetch = 0 : i64, scratch_operands = 0 : i64, tpu.core_type = #tpu.core_type<tc>, window_params = [{transform_indices = @transform_0, window_bounds = array<i64: 2, 192, 36>}, {pipeline_mode = #tpu.pipeline_mode<synchronous>, transform_indices = @transform_1, window_bounds = array<i64: 36, 8>}, {pipeline_mode = #tpu.pipeline_mode<synchronous>, transform_indices = @transform_2, window_bounds = array<i64: 1, 1, 8>}, {transform_indices = @transform_3, window_bounds = array<i64: 192, 8>}]} {
    %c0 = arith.constant 0 : index
    %c0_0 = arith.constant 0 : index
    %c0_1 = arith.constant 0 : index
    %0 = vector.load %arg1[%c0, %c0_0, %c0_1] : memref<2x192x36xbf16, #tpu.memory_space<vmem>>, vector<2x192x36xbf16>
    %c0_2 = arith.constant 0 : index
    %c0_3 = arith.constant 0 : index
    %1 = vector.load %arg2[%c0_2, %c0_3] : memref<36x8xbf16, #tpu.memory_space<vmem>>, vector<36x8xbf16>
    %c0_4 = arith.constant 0 : index
    %c0_5 = arith.constant 0 : index
    %c0_6 = arith.constant 0 : index
    %2 = vector.load %arg3[%c0_4, %c0_5, %c0_6] : memref<1x1x8xf32, #tpu.memory_space<vmem>>, vector<1x1x8xf32>
    %cst = arith.constant dense<0.000000e+00> : vector<2x192x8xf32>
    %3 = tpu.matmul %0, %1, %cst {dimension_numbers = #tpu.dot_dimension_numbers<[2], [0], [0, 1], [1], [0, 0, 0, 1, 1, 1], [], []>} : vector<2x192x36xbf16>, vector<36x8xbf16>, vector<2x192x8xf32> -> vector<2x192x8xf32>
    %4 = vector.broadcast %2 : vector<1x1x8xf32> to vector<2x192x8xf32>
    %5 = arith.addf %3, %4 : vector<2x192x8xf32>
    %cst_7 = arith.constant 0.000000e+00 : f32
    %6 = vector.broadcast %cst_7 : f32 to vector<2x192x8xf32>
    %7 = arith.cmpf ogt, %5, %6 : vector<2x192x8xf32>
    %cst_8 = arith.constant 0.00999999977 : f32
    %8 = vector.broadcast %cst_8 : f32 to vector<2x192x8xf32>
    %9 = arith.mulf %8, %5 : vector<2x192x8xf32>
    %10 = arith.select %7, %5, %9 : vector<2x192x8xi1>, vector<2x192x8xf32>
    %cst_9 = arith.constant dense<0.000000e+00> : vector<192x8xf32>
    %11 = vector.multi_reduction <add>, %10, %cst_9 [0] : vector<2x192x8xf32> to vector<192x8xf32>
    %cst_10 = arith.constant 2.000000e+00 : f32
    %12 = vector.broadcast %cst_10 : f32 to vector<192x8xf32>
    %13 = arith.divf %11, %12 : vector<192x8xf32>
    %c0_11 = arith.constant 0 : index
    %c0_12 = arith.constant 0 : index
    %14 = vector.load %arg4[%c0_11, %c0_12] : memref<192x8xf32, #tpu.memory_space<vmem>>, vector<192x8xf32>
    tpu.vector_store %arg4[%c0_11, %c0_12], %13 {strides = array<i32>} : memref<192x8xf32, #tpu.memory_space<vmem>>, vector<192x8xf32>,
    return
  }
  func.func @transform_0(%arg0: i32) -> (i32, i32, i32) {
    %c0_i32 = arith.constant 0 : i32
    %c0_i32_0 = arith.constant 0 : i32
    %c0_i32_1 = arith.constant 0 : i32
    return %c0_i32, %arg0, %c0_i32_0 : i32, i32, i32
  }
  func.func @transform_1(%arg0: i32) -> (i32, i32) {
    %c0_i32 = arith.constant 0 : i32
    %c0_i32_0 = arith.constant 0 : i32
    %c0_i32_1 = arith.constant 0 : i32
    return %c0_i32, %c0_i32_0 : i32, i32
  }
  func.func @transform_2(%arg0: i32) -> (i32, i32, i32) {
    %c0_i32 = arith.constant 0 : i32
    %c0_i32_0 = arith.constant 0 : i32
    %c0_i32_1 = arith.constant 0 : i32
    %c0_i32_2 = arith.constant 0 : i32
    return %c0_i32, %c0_i32_0, %c0_i32_1 : i32, i32, i32
  }
  func.func @transform_3(%arg0: i32) -> (i32, i32) {
    %c0_i32 = arith.constant 0 : i32
    %c0_i32_0 = arith.constant 0 : i32
    return %arg0, %c0_i32 : i32, i32
  }
}

</mosaic_0001>

<llo_original>
// kernel: tpu_custom_call.1
$region0: #{tpu_custom_call.1}
  #allocation0 [shape = 'u32[]', space=smem, size = 0x4, offset = 0x4, fixed_abs, tag = 'smem constant byte address 0x4 - core index']
  #allocation1 [shape = 'u32[144,128]{1,0:T(1,128)}', space=vmem, size = 0x12000, scoped, tag = 'internal scratch']
  %s0 = inlined_call_operand.vmem [shape: bf16[2,196,36], index: 0, kind: input, shape index: {}]
  %s1 = inlined_call_operand.vmem [shape: bf16[36,8], index: 1, kind: input, shape index: {}]
  %s2 = inlined_call_operand.vmem [shape: f32[1,1,8], index: 2, kind: input, shape index: {}]
  %s3 = inlined_call_operand.vmem [shape: f32[196,8], index: 3, kind: output, shape index: {}]
  %s4 = sld [smem:[#allocation0]]
  $region155: #{tpu_custom_call.1} parent=0
    _
  %s6 = ssub.s32 1, %s4
  %s7 = scalar_select 0, %s6, %s4
  $region1: #{tpu_custom_call.1} parent=0
    #allocation2 [shape = 'u8[196608]{0}', space=vmem, size = 0x30000, scoped, tag = 'input window, operand 0']
    #allocation3 [shape = 'u8[196608]{0}', space=vmem, size = 0x30000, scoped, tag = 'output window, operand 0']
    loop: start=0, step=1, limit=4
    $region2: #{tpu_custom_call.1} parent=1 // loop_pre_header
      _
    $region3: #{tpu_custom_call.1} parent=1 // loop_header
      %s9 = sphi 0, %s13
      %p10 = scmp.ge.s32.totalorder %s9, 4
      %s19 = sphi 0, %s21
      %s22 = sphi 0, %s19
      %s23 = sphi 0, %s22
      %s39 = sphi 0, %s23
      %s43 = sphi 0, %s43
      %s45 = sphi 0, %s43
      %s46 = sphi 0, %s45
      %s60 = sphi 0, %s46
      %s64 = sphi 0, %s64
      %s66 = sphi 0, %s64
      %s67 = sphi 0, %s66
      %s81 = sphi 0, %s67
      %s87 = sphi 0, %s89
      %s90 = sphi 0, %s87
      %s91 = sphi 0, %s90
      %s107 = sphi 0, %s91
    $region4: #{tpu_custom_call.1} parent=1 // loop_header_branch
      %12 = sbr.rel (%p10) target = $region8
    $region5: #{tpu_custom_call.1} parent=1 // loop_body
      %s14 = ssub.s32 %s9, 1
      %s15 = ssub.s32 %s9, 2
      %s16 = sadd.s32 %s9, 1
      %s17 = ssub.s32 %s9, %s16
      %p18 = scmp.eq.s32.totalorder %s17, 0
      %s20 = sadd.s32 %s19, 1
      %s21 = scalar_select %p18, %s19, %s20
      %p24 = pneg %p18
      %p25 = scmp.eq.s32.totalorder %s9, 1
      %p26 = por %p24, %p25
      %p27 = scmp.ne.s32.totalorder %s19, %s22
      %p28 = scmp.eq.s32.totalorder %s9, 0
      %p29 = por %p27, %p28
      %p30 = scmp.ne.s32.totalorder %s19, %s22
      %p31 = scmp.eq.s32.totalorder %s14, 1
      %p32 = por %p30, %p31
      %p33 = scmp.ne.s32.totalorder %s22, %s23
      %p34 = scmp.eq.s32.totalorder %s14, 0
      %p35 = por %p33, %p34
      %p36 = scmp.ne.s32.totalorder %s22, %s23
      %p37 = scmp.eq.s32.totalorder %s15, 1
      %p38 = por %p36, %p37
      %p40 = scmp.ne.s32.totalorder %s23, %s39
      %p41 = scmp.eq.s32.totalorder %s15, 0
      %p42 = por %p40, %p41
      %s44 = sadd.s32 %s43, 1
      %p47 = scmp.eq.s32.totalorder %s9, 1
      %p48 = scmp.ne.s32.totalorder %s43, %s45
      %p49 = scmp.eq.s32.totalorder %s9, 0
      %p50 = por %p48, %p49
      %p51 = scmp.ne.s32.totalorder %s43, %s45
      %p52 = scmp.eq.s32.totalorder %s14, 1
      %p53 = por %p51, %p52
      %p54 = scmp.ne.s32.totalorder %s45, %s46
      %p55 = scmp.eq.s32.totalorder %s14, 0
      %p56 = por %p54, %p55
      %p57 = scmp.ne.s32.totalorder %s45, %s46
      %p58 = scmp.eq.s32.totalorder %s15, 1
      %p59 = por %p57, %p58
      %p61 = scmp.ne.s32.totalorder %s46, %s60
      %p62 = scmp.eq.s32.totalorder %s15, 0
      %p63 = por %p61, %p62
      %s65 = sadd.s32 %s64, 1
      %p68 = scmp.eq.s32.totalorder %s9, 1
      %p69 = scmp.ne.s32.totalorder %s64, %s66
      %p70 = scmp.eq.s32.totalorder %s9, 0
      %p71 = por %p69, %p70
      %p72 = scmp.ne.s32.totalorder %s64, %s66
      %p73 = scmp.eq.s32.totalorder %s14, 1
      %p74 = por %p72, %p73
      %p75 = scmp.ne.s32.totalorder %s66, %s67
      %p76 = scmp.eq.s32.totalorder %s14, 0
      %p77 = por %p75, %p76
      %p78 = scmp.ne.s32.totalorder %s66, %s67
      %p79 = scmp.eq.s32.totalorder %s15, 1
      %p80 = por %p78, %p79
      %p82 = scmp.ne.s32.totalorder %s67, %s81
      %p83 = scmp.eq.s32.totalorder %s15, 0
      %p84 = por %p82, %p83
      %s85 = ssub.s32 %s9, %s16
      %p86 = scmp.eq.s32.totalorder %s85, 0
      %s88 = sadd.s32 %s87, 1
      %s89 = scalar_select %p86, %s87, %s88
      %p92 = pneg %p86
      %p93 = scmp.eq.s32.totalorder %s9, 1
      %p94 = por %p92, %p93
      %p95 = scmp.ne.s32.totalorder %s87, %s90
      %p96 = scmp.eq.s32.totalorder %s9, 0
      %p97 = por %p95, %p96
      %p98 = scmp.ne.s32.totalorder %s87, %s90
      %p99 = scmp.eq.s32.totalorder %s14, 1
      %p100 = por %p98, %p99
      %p101 = scmp.ne.s32.totalorder %s90, %s91
      %p102 = scmp.eq.s32.totalorder %s14, 0
      %p103 = por %p101, %p102
      %p104 = scmp.ne.s32.totalorder %s90, %s91
      %p105 = scmp.eq.s32.totalorder %s15, 1
      %p106 = por %p104, %p105
      %p108 = scmp.ne.s32.totalorder %s91, %s107
      %p109 = scmp.eq.s32.totalorder %s15, 0
      %p110 = por %p108, %p109
      %p111 = scmp.le.s32.totalorder 1, %s9
      %p112 = scmp.lt.s32.totalorder %s9, 3
      %p113 = pnand %p111, %p112
      %p114 = pneg %p113
      // Predicated region
      $region9: #{tpu_custom_call.1} parent=5 // pred_check
        _
      $region10: #{tpu_custom_call.1} parent=5 // pred_check_branch
        %116 = sbr.rel (%p113) target = $region12
      $region11: #{tpu_custom_call.1} parent=5 // pred_region
        %s117 = ssub.s32 %s9, 1
        // Predicated region
        $region13: #{tpu_custom_call.1} parent=11 // pred_check
          %p118 = pneg %p56
        $region14: #{tpu_custom_call.1} parent=11 // pred_check_branch
          %120 = sbr.rel (%p118) target = $region16
        $region15: #{tpu_custom_call.1} parent=11 // pred_region
          _
        $region16: #{tpu_custom_call.1} parent=11 // pred_fallthru
          _
        // Predicated region
        $region17: #{tpu_custom_call.1} parent=11 // pred_check
          %p121 = pneg %p77
        $region18: #{tpu_custom_call.1} parent=11 // pred_check_branch
          %123 = sbr.rel (%p121) target = $region20
        $region19: #{tpu_custom_call.1} parent=11 // pred_region
          _
        $region20: #{tpu_custom_call.1} parent=11 // pred_fallthru
          _
      $region12: #{tpu_custom_call.1} parent=5 // pred_fallthru
        _
      %p124 = scmp.lt.s32.totalorder %s9, 2
      // Predicated region
      $region21: #{tpu_custom_call.1} parent=5 // pred_check
        %p125 = pneg %p124
      $region22: #{tpu_custom_call.1} parent=5 // pred_check_branch
        %127 = sbr.rel (%p125) target = $region24
      $region23: #{tpu_custom_call.1} parent=5 // pred_region
        // Predicated region
        $region25: #{tpu_custom_call.1} parent=23 // pred_check
          %p128 = pneg %p29
        $region26: #{tpu_custom_call.1} parent=23 // pred_check_branch
          %130 = sbr.rel (%p128) target = $region28
        $region27: #{tpu_custom_call.1} parent=23 // pred_region
          %s131 = sand.u32 %s19, 1
          %s132 = sand.u32 %s19, 1
          %s133 = smul.addr %s132, 192
          %s134 = scalar_lea.vmem [#allocation2], %s133
          %s135 = smul.u32 24, %s9
          %s136 = ssub.s32 25, %s135
          %p137 = scmp.lt.s32.totalorder %s136, 24
          %s138 = scalar_select %p137, %s136, 24
          %s139 = smul.u32 128, %s138
          %p140 = scmp.ne.s32.totalorder 0, %s139
          %s141 = smul.addr %s135, 4
          %s142 = scalar_lea.vmem %s0, %s141
          // Predicated region
          $region29: #{tpu_custom_call.1} parent=27 // pred_check
            %p143 = pneg %p140
          $region30: #{tpu_custom_call.1} parent=27 // pred_check_branch
            %145 = sbr.rel (%p143) target = $region32
          $region31: #{tpu_custom_call.1} parent=27 // pred_region
            // Predicated region
            $region33: #{tpu_custom_call.1} parent=31 // pred_check
              _
            $region34: #{tpu_custom_call.1} parent=31 // pred_check_branch
              %147 = sbr.rel target = $region36
            $region35: #{tpu_custom_call.1} parent=31 // pred_region
              // Predicated region
              $region55: #{tpu_custom_call.1} parent=35 // pred_check
                _
              $region56: #{tpu_custom_call.1} parent=35 // pred_check_branch
                %293 = sbr.rel (0) target = $region58
              $region57: #{tpu_custom_call.1} parent=35 // pred_region
                %s294 = sdiv.u32.pop %s138, 24
                %s295 = srem.u32.pop %s138, 24
                // While loop
                $region59: #{tpu_custom_call.1} parent=57 // loop_pre_header
                  _
                $region60: #{tpu_custom_call.1} parent=57 // loop_header
                  %s297 = sphi 0, %s299
                  %p298 = scmp.ge.s32.totalorder %s297, %s294
                  %s302 = sphi 0, %s307
                  %s303 = sphi %s142, %s310
                  %s304 = sphi %s134, %s311
                $region61: #{tpu_custom_call.1} parent=57 // loop_header_branch
                  %301 = sbr.rel (%p298) target = $region65
                $region62: #{tpu_custom_call.1} parent=57 // loop_body
                  %s305 = sadd.s32 1, %s302
                  %p306 = scmp.ge.s32.totalorder %s305, %s294
                  %s307 = scalar_select %p306, 0, %s305
                  %s308 = smul.u32 %s307, 96
                  %s309 = smul.u32 %s307, 96
                  %s310 = scalar_lea.vmem %s142, %s308
                  %s311 = scalar_lea.vmem %s134, %s309 [#allocation2]
                $region63: #{tpu_custom_call.1} parent=57 // loop_footer
                  %s299 = sadd.s32 %s297, 1
                $region64: #{tpu_custom_call.1} parent=57 // loop_footer_branch
                  %296 = sbr.rel target = $region60
                $region65: #{tpu_custom_call.1} parent=57 // loop_exit
                  _
                %s312 = sdiv.u32.pop %s138, 24
                %s313 = srem.u32.pop %s138, 24
                %s314 = smul.u32 %s312, 24
                %s315 = smul.u32 4, %s314
                %s316 = scalar_lea.vmem %s142, %s315
                %s317 = smul.u32 4, %s314
                %s318 = scalar_lea.vmem %s134, %s317 [#allocation2]
                // While loop
                $region66: #{tpu_custom_call.1} parent=57 // loop_pre_header
                  _
                $region67: #{tpu_custom_call.1} parent=57 // loop_header
                  %s320 = sphi 0, %s322
                  %p321 = scmp.ge.s32.totalorder %s320, %s313
                  %s325 = sphi 0, %s330
                  %s326 = sphi %s316, %s333
                  %s327 = sphi %s318, %s334
                $region68: #{tpu_custom_call.1} parent=57 // loop_header_branch
                  %324 = sbr.rel (%p321) target = $region72
                $region69: #{tpu_custom_call.1} parent=57 // loop_body
                  %s328 = sadd.s32 1, %s325
                  %p329 = scmp.ge.s32.totalorder %s328, %s313
                  %s330 = scalar_select %p329, 0, %s328
                  %s331 = smul.u32 %s330, 4
                  %s332 = smul.u32 %s330, 4
                  %s333 = scalar_lea.vmem %s316, %s331
                  %s334 = scalar_lea.vmem %s318, %s332 [#allocation2]
                $region70: #{tpu_custom_call.1} parent=57 // loop_footer
                  %s322 = sadd.s32 %s320, 1
                $region71: #{tpu_custom_call.1} parent=57 // loop_footer_branch
                  %319 = sbr.rel target = $region67
                $region72: #{tpu_custom_call.1} parent=57 // loop_exit
                  _
                %s336 = sdiv.u32.pop %s138, 24
                %s337 = srem.u32.pop %s138, 24
                // While loop
                $region73: #{tpu_custom_call.1} parent=57 // loop_pre_header
                  _
                $region74: #{tpu_custom_call.1} parent=57 // loop_header
                  %s339 = sphi 0, %s341
                  %p340 = scmp.ge.s32.totalorder %s339, %s336
                  %s344 = sphi 0, %s445
                  %s345 = sphi %s142, %s448
                  %s346 = sphi %s134, %s449
                $region75: #{tpu_custom_call.1} parent=57 // loop_header_branch
                  %343 = sbr.rel (%p340) target = $region79
                $region76: #{tpu_custom_call.1} parent=57 // loop_body
                  %v347 = vld [vmem:[%s345] sm:$0xf]
                  %348 = vst [vmem:[%s346] sm:$0xf] %v347
                  %v349 = vld [vmem:[%s345 + $0x4] sm:$0xf]
                  %350 = vst [vmem:[%s346 + $0x4] sm:$0xf] %v349
                  %v351 = vld [vmem:[%s345 + $0x8] sm:$0xf]
                  %352 = vst [vmem:[%s346 + $0x8] sm:$0xf] %v351
                  %v353 = vld [vmem:[%s345 + $0xc] sm:$0xf]
                  %354 = vst [vmem:[%s346 + $0xc] sm:$0xf] %v353
                  %v355 = vld [vmem:[%s345 + $0x10] sm:$0xf]
                  %356 = vst [vmem:[%s346 + $0x10] sm:$0xf] %v355
                  %v357 = vld [vmem:[%s345 + $0x14] sm:$0xf]
                  %358 = vst [vmem:[%s346 + $0x14] sm:$0xf] %v357
                  %v359 = vld [vmem:[%s345 + $0x18] sm:$0xf]
                  %360 = vst [vmem:[%s346 + $0x18] sm:$0xf] %v359
                  %v361 = vld [vmem:[%s345 + $0x1c] sm:$0xf]
                  %362 = vst [vmem:[%s346 + $0x1c] sm:$0xf] %v361
                  %v363 = vld [vmem:[%s345 + $0x20] sm:$0xf]
                  %364 = vst [vmem:[%s346 + $0x20] sm:$0xf] %v363
                  %v365 = vld [vmem:[%s345 + $0x24] sm:$0xf]
                  %366 = vst [vmem:[%s346 + $0x24] sm:$0xf] %v365
                  %v367 = vld [vmem:[%s345 + $0x28] sm:$0xf]
                  %368 = vst [vmem:[%s346 + $0x28] sm:$0xf] %v367
                  %v369 = vld [vmem:[%s345 + $0x2c] sm:$0xf]
                  %370 = vst [vmem:[%s346 + $0x2c] sm:$0xf] %v369
                  %v371 = vld [vmem:[%s345 + $0x30] sm:$0xf]
                  %372 = vst [vmem:[%s346 + $0x30] sm:$0xf] %v371
                  %v373 = vld [vmem:[%s345 + $0x34] sm:$0xf]
                  %374 = vst [vmem:[%s346 + $0x34] sm:$0xf] %v373
                  %v375 = vld [vmem:[%s345 + $0x38] sm:$0xf]
                  %376 = vst [vmem:[%s346 + $0x38] sm:$0xf] %v375
                  %v377 = vld [vmem:[%s345 + $0x3c] sm:$0xf]
                  %378 = vst [vmem:[%s346 + $0x3c] sm:$0xf] %v377
                  %v379 = vld [vmem:[%s345 + $0x40] sm:$0xf]
                  %380 = vst [vmem:[%s346 + $0x40] sm:$0xf] %v379
                  %v381 = vld [vmem:[%s345 + $0x44] sm:$0xf]
                  %382 = vst [vmem:[%s346 + $0x44] sm:$0xf] %v381
                  %v383 = vld [vmem:[%s345 + $0x48] sm:$0xf]
                  %384 = vst [vmem:[%s346 + $0x48] sm:$0xf] %v383
                  %v385 = vld [vmem:[%s345 + $0x4c] sm:$0xf]
                  %386 = vst [vmem:[%s346 + $0x4c] sm:$0xf] %v385
                  %v387 = vld [vmem:[%s345 + $0x50] sm:$0xf]
                  %388 = vst [vmem:[%s346 + $0x50] sm:$0xf] %v387
                  %v389 = vld [vmem:[%s345 + $0x54] sm:$0xf]
                  %390 = vst [vmem:[%s346 + $0x54] sm:$0xf] %v389
                  %v391 = vld [vmem:[%s345 + $0x58] sm:$0xf]
                  %392 = vst [vmem:[%s346 + $0x58] sm:$0xf] %v391
                  %v393 = vld [vmem:[%s345 + $0x5c] sm:$0xf]
                  %394 = vst [vmem:[%s346 + $0x5c] sm:$0xf] %v393
                  %v395 = vld [vmem:[%s345 + $0x64] sm:$0xf]
                  %396 = vst [vmem:[%s346 + $0x60] sm:$0xf] %v395
                  %v397 = vld [vmem:[%s345 + $0x68] sm:$0xf]
                  %398 = vst [vmem:[%s346 + $0x64] sm:$0xf] %v397
                  %v399 = vld [vmem:[%s345 + $0x6c] sm:$0xf]
                  %400 = vst [vmem:[%s346 + $0x68] sm:$0xf] %v399
                  %v401 = vld [vmem:[%s345 + $0x70] sm:$0xf]
                  %402 = vst [vmem:[%s346 + $0x6c] sm:$0xf] %v401
                  %v403 = vld [vmem:[%s345 + $0x74] sm:$0xf]
                  %404 = vst [vmem:[%s346 + $0x70] sm:$0xf] %v403
                  %v405 = vld [vmem:[%s345 + $0x78] sm:$0xf]
                  %406 = vst [vmem:[%s346 + $0x74] sm:$0xf] %v405
                  %v407 = vld [vmem:[%s345 + $0x7c] sm:$0xf]
                  %408 = vst [vmem:[%s346 + $0x78] sm:$0xf] %v407
                  %v409 = vld [vmem:[%s345 + $0x80] sm:$0xf]
                  %410 = vst [vmem:[%s346 + $0x7c] sm:$0xf] %v409
                  %v411 = vld [vmem:[%s345 + $0x84] sm:$0xf]
                  %412 = vst [vmem:[%s346 + $0x80] sm:$0xf] %v411
                  %v413 = vld [vmem:[%s345 + $0x88] sm:$0xf]
                  %414 = vst [vmem:[%s346 + $0x84] sm:$0xf] %v413
                  %v415 = vld [vmem:[%s345 + $0x8c] sm:$0xf]
                  %416 = vst [vmem:[%s346 + $0x88] sm:$0xf] %v415
                  %v417 = vld [vmem:[%s345 + $0x90] sm:$0xf]
                  %418 = vst [vmem:[%s346 + $0x8c] sm:$0xf] %v417
                  %v419 = vld [vmem:[%s345 + $0x94] sm:$0xf]
                  %420 = vst [vmem:[%s346 + $0x90] sm:$0xf] %v419
                  %v421 = vld [vmem:[%s345 + $0x98] sm:$0xf]
                  %422 = vst [vmem:[%s346 + $0x94] sm:$0xf] %v421
                  %v423 = vld [vmem:[%s345 + $0x9c] sm:$0xf]
                  %424 = vst [vmem:[%s346 + $0x98] sm:$0xf] %v423
                  %v425 = vld [vmem:[%s345 + $0xa0] sm:$0xf]
                  %426 = vst [vmem:[%s346 + $0x9c] sm:$0xf] %v425
                  %v427 = vld [vmem:[%s345 + $0xa4] sm:$0xf]
                  %428 = vst [vmem:[%s346 + $0xa0] sm:$0xf] %v427
                  %v429 = vld [vmem:[%s345 + $0xa8] sm:$0xf]
                  %430 = vst [vmem:[%s346 + $0xa4] sm:$0xf] %v429
                  %v431 = vld [vmem:[%s345 + $0xac] sm:$0xf]
                  %432 = vst [vmem:[%s346 + $0xa8] sm:$0xf] %v431
                  %v433 = vld [vmem:[%s345 + $0xb0] sm:$0xf]
                  %434 = vst [vmem:[%s346 + $0xac] sm:$0xf] %v433
                  %v435 = vld [vmem:[%s345 + $0xb4] sm:$0xf]
                  %436 = vst [vmem:[%s346 + $0xb0] sm:$0xf] %v435
                  %v437 = vld [vmem:[%s345 + $0xb8] sm:$0xf]
                  %438 = vst [vmem:[%s346 + $0xb4] sm:$0xf] %v437
                  %v439 = vld [vmem:[%s345 + $0xbc] sm:$0xf]
                  %440 = vst [vmem:[%s346 + $0xb8] sm:$0xf] %v439
                  %v441 = vld [vmem:[%s345 + $0xc0] sm:$0xf]
                  %442 = vst [vmem:[%s346 + $0xbc] sm:$0xf] %v441
                  %s443 = sadd.s32 1, %s344
                  %p444 = scmp.ge.s32.totalorder %s443, %s336
                  %s445 = scalar_select %p444, 0, %s443
                  %s446 = smul.u32 %s445, 96
                  %s447 = smul.u32 %s445, 96
                  %s448 = scalar_lea.vmem %s142, %s446
                  %s449 = scalar_lea.vmem %s134, %s447 [#allocation2]
                $region77: #{tpu_custom_call.1} parent=57 // loop_footer
                  %s341 = sadd.s32 %s339, 1
                $region78: #{tpu_custom_call.1} parent=57 // loop_footer_branch
                  %338 = sbr.rel target = $region74
                $region79: #{tpu_custom_call.1} parent=57 // loop_exit
                  _
                %s450 = sdiv.u32.pop %s138, 24
                %s451 = srem.u32.pop %s138, 24
                %s452 = smul.u32 %s450, 24
                %s453 = smul.u32 4, %s452
                %s454 = scalar_lea.vmem %s142, %s453
                %s455 = smul.u32 4, %s452
                %s456 = scalar_lea.vmem %s134, %s455 [#allocation2]
                // While loop
                $region80: #{tpu_custom_call.1} parent=57 // loop_pre_header
                  _
                $region81: #{tpu_custom_call.1} parent=57 // loop_header
                  %s458 = sphi 0, %s460
                  %p459 = scmp.ge.s32.totalorder %s458, %s451
                  %s463 = sphi 0, %s472
                  %s464 = sphi %s454, %s475
                  %s465 = sphi %s456, %s476
                $region82: #{tpu_custom_call.1} parent=57 // loop_header_branch
                  %462 = sbr.rel (%p459) target = $region86
                $region83: #{tpu_custom_call.1} parent=57 // loop_body
                  %v466 = vld [vmem:[%s464] sm:$0xf]
                  %467 = vst [vmem:[%s465] sm:$0xf] %v466
                  %v468 = vld [vmem:[%s464 + $0x64] sm:$0xf]
                  %469 = vst [vmem:[%s465 + $0x60] sm:$0xf] %v468
                  %s470 = sadd.s32 1, %s463
                  %p471 = scmp.ge.s32.totalorder %s470, %s451
                  %s472 = scalar_select %p471, 0, %s470
                  %s473 = smul.u32 %s472, 4
                  %s474 = smul.u32 %s472, 4
                  %s475 = scalar_lea.vmem %s454, %s473
                  %s476 = scalar_lea.vmem %s456, %s474 [#allocation2]
                $region84: #{tpu_custom_call.1} parent=57 // loop_footer
                  %s460 = sadd.s32 %s458, 1
                $region85: #{tpu_custom_call.1} parent=57 // loop_footer_branch
                  %457 = sbr.rel target = $region81
                $region86: #{tpu_custom_call.1} parent=57 // loop_exit
                  _
              $region58: #{tpu_custom_call.1} parent=35 // pred_fallthru
                _
            $region36: #{tpu_custom_call.1} parent=31 // pred_fallthru
              _
            // Predicated region
            $region37: #{tpu_custom_call.1} parent=31 // pred_check
              _
            $region38: #{tpu_custom_call.1} parent=31 // pred_check_branch
              %149 = sbr.rel (0) target = $region40
            $region39: #{tpu_custom_call.1} parent=31 // pred_region
              %s151 = sdiv.u32.pop %s138, 24
              %s152 = srem.u32.pop %s138, 24
              // While loop
              $region41: #{tpu_custom_call.1} parent=39 // loop_pre_header
                _
              $region42: #{tpu_custom_call.1} parent=39 // loop_header
                %s154 = sphi 0, %s156
                %p155 = scmp.ge.s32.totalorder %s154, %s151
                %s159 = sphi 0, %s260
                %s160 = sphi %s142, %s263
                %s161 = sphi %s134, %s264
              $region43: #{tpu_custom_call.1} parent=39 // loop_header_branch
                %158 = sbr.rel (%p155) target = $region47
              $region44: #{tpu_custom_call.1} parent=39 // loop_body
                %v162 = vld [vmem:[%s160] sm:$0xf]
                %163 = vst [vmem:[%s161] sm:$0xf] %v162
                %v164 = vld [vmem:[%s160 + $0x4] sm:$0xf]
                %165 = vst [vmem:[%s161 + $0x4] sm:$0xf] %v164
                %v166 = vld [vmem:[%s160 + $0x8] sm:$0xf]
                %167 = vst [vmem:[%s161 + $0x8] sm:$0xf] %v166
                %v168 = vld [vmem:[%s160 + $0xc] sm:$0xf]
                %169 = vst [vmem:[%s161 + $0xc] sm:$0xf] %v168
                %v170 = vld [vmem:[%s160 + $0x10] sm:$0xf]
                %171 = vst [vmem:[%s161 + $0x10] sm:$0xf] %v170
                %v172 = vld [vmem:[%s160 + $0x14] sm:$0xf]
                %173 = vst [vmem:[%s161 + $0x14] sm:$0xf] %v172
                %v174 = vld [vmem:[%s160 + $0x18] sm:$0xf]
                %175 = vst [vmem:[%s161 + $0x18] sm:$0xf] %v174
                %v176 = vld [vmem:[%s160 + $0x1c] sm:$0xf]
                %177 = vst [vmem:[%s161 + $0x1c] sm:$0xf] %v176
                %v178 = vld [vmem:[%s160 + $0x20] sm:$0xf]
                %179 = vst [vmem:[%s161 + $0x20] sm:$0xf] %v178
                %v180 = vld [vmem:[%s160 + $0x24] sm:$0xf]
                %181 = vst [vmem:[%s161 + $0x24] sm:$0xf] %v180
                %v182 = vld [vmem:[%s160 + $0x28] sm:$0xf]
                %183 = vst [vmem:[%s161 + $0x28] sm:$0xf] %v182
                %v184 = vld [vmem:[%s160 + $0x2c] sm:$0xf]
                %185 = vst [vmem:[%s161 + $0x2c] sm:$0xf] %v184
                %v186 = vld [vmem:[%s160 + $0x30] sm:$0xf]
                %187 = vst [vmem:[%s161 + $0x30] sm:$0xf] %v186
                %v188 = vld [vmem:[%s160 + $0x34] sm:$0xf]
                %189 = vst [vmem:[%s161 + $0x34] sm:$0xf] %v188
                %v190 = vld [vmem:[%s160 + $0x38] sm:$0xf]
                %191 = vst [vmem:[%s161 + $0x38] sm:$0xf] %v190
                %v192 = vld [vmem:[%s160 + $0x3c] sm:$0xf]
                %193 = vst [vmem:[%s161 + $0x3c] sm:$0xf] %v192
                %v194 = vld [vmem:[%s160 + $0x40] sm:$0xf]
                %195 = vst [vmem:[%s161 + $0x40] sm:$0xf] %v194
                %v196 = vld [vmem:[%s160 + $0x44] sm:$0xf]
                %197 = vst [vmem:[%s161 + $0x44] sm:$0xf] %v196
                %v198 = vld [vmem:[%s160 + $0x48] sm:$0xf]
                %199 = vst [vmem:[%s161 + $0x48] sm:$0xf] %v198
                %v200 = vld [vmem:[%s160 + $0x4c] sm:$0xf]
                %201 = vst [vmem:[%s161 + $0x4c] sm:$0xf] %v200
                %v202 = vld [vmem:[%s160 + $0x50] sm:$0xf]
                %203 = vst [vmem:[%s161 + $0x50] sm:$0xf] %v202
                %v204 = vld [vmem:[%s160 + $0x54] sm:$0xf]
                %205 = vst [vmem:[%s161 + $0x54] sm:$0xf] %v204
                %v206 = vld [vmem:[%s160 + $0x58] sm:$0xf]
                %207 = vst [vmem:[%s161 + $0x58] sm:$0xf] %v206
                %v208 = vld [vmem:[%s160 + $0x5c] sm:$0xf]
                %209 = vst [vmem:[%s161 + $0x5c] sm:$0xf] %v208
                %v210 = vld [vmem:[%s160 + $0x64] sm:$0xf]
                %211 = vst [vmem:[%s161 + $0x60] sm:$0xf] %v210
                %v212 = vld [vmem:[%s160 + $0x68] sm:$0xf]
                %213 = vst [vmem:[%s161 + $0x64] sm:$0xf] %v212
                %v214 = vld [vmem:[%s160 + $0x6c] sm:$0xf]
                %215 = vst [vmem:[%s161 + $0x68] sm:$0xf] %v214
                %v216 = vld [vmem:[%s160 + $0x70] sm:$0xf]
                %217 = vst [vmem:[%s161 + $0x6c] sm:$0xf] %v216
                %v218 = vld [vmem:[%s160 + $0x74] sm:$0xf]
                %219 = vst [vmem:[%s161 + $0x70] sm:$0xf] %v218
                %v220 = vld [vmem:[%s160 + $0x78] sm:$0xf]
                %221 = vst [vmem:[%s161 + $0x74] sm:$0xf] %v220
                %v222 = vld [vmem:[%s160 + $0x7c] sm:$0xf]
                %223 = vst [vmem:[%s161 + $0x78] sm:$0xf] %v222
                %v224 = vld [vmem:[%s160 + $0x80] sm:$0xf]
                %225 = vst [vmem:[%s161 + $0x7c] sm:$0xf] %v224
                %v226 = vld [vmem:[%s160 + $0x84] sm:$0xf]
                %227 = vst [vmem:[%s161 + $0x80] sm:$0xf] %v226
                %v228 = vld [vmem:[%s160 + $0x88] sm:$0xf]
                %229 = vst [vmem:[%s161 + $0x84] sm:$0xf] %v228
                %v230 = vld [vmem:[%s160 + $0x8c] sm:$0xf]
                %231 = vst [vmem:[%s161 + $0x88] sm:$0xf] %v230
                %v232 = vld [vmem:[%s160 + $0x90] sm:$0xf]
                %233 = vst [vmem:[%s161 + $0x8c] sm:$0xf] %v232
                %v234 = vld [vmem:[%s160 + $0x94] sm:$0xf]
                %235 = vst [vmem:[%s161 + $0x90] sm:$0xf] %v234
                %v236 = vld [vmem:[%s160 + $0x98] sm:$0xf]
                %237 = vst [vmem:[%s161 + $0x94] sm:$0xf] %v236
                %v238 = vld [vmem:[%s160 + $0x9c] sm:$0xf]
                %239 = vst [vmem:[%s161 + $0x98] sm:$0xf] %v238
                %v240 = vld [vmem:[%s160 + $0xa0] sm:$0xf]
                %241 = vst [vmem:[%s161 + $0x9c] sm:$0xf] %v240
                %v242 = vld [vmem:[%s160 + $0xa4] sm:$0xf]
                %243 = vst [vmem:[%s161 + $0xa0] sm:$0xf] %v242
                %v244 = vld [vmem:[%s160 + $0xa8] sm:$0xf]
                %245 = vst [vmem:[%s161 + $0xa4] sm:$0xf] %v244
                %v246 = vld [vmem:[%s160 + $0xac] sm:$0xf]
                %247 = vst [vmem:[%s161 + $0xa8] sm:$0xf] %v246
                %v248 = vld [vmem:[%s160 + $0xb0] sm:$0xf]
                %249 = vst [vmem:[%s161 + $0xac] sm:$0xf] %v248
                %v250 = vld [vmem:[%s160 + $0xb4] sm:$0xf]
                %251 = vst [vmem:[%s161 + $0xb0] sm:$0xf] %v250
                %v252 = vld [vmem:[%s160 + $0xb8] sm:$0xf]
                %253 = vst [vmem:[%s161 + $0xb4] sm:$0xf] %v252
                %v254 = vld [vmem:[%s160 + $0xbc] sm:$0xf]
                %255 = vst [vmem:[%s161 + $0xb8] sm:$0xf] %v254
                %v256 = vld [vmem:[%s160 + $0xc0] sm:$0xf]
                %257 = vst [vmem:[%s161 + $0xbc] sm:$0xf] %v256
                %s258 = sadd.s32 1, %s159
                %p259 = scmp.ge.s32.totalorder %s258, %s151
                %s260 = scalar_select %p259, 0, %s258
                %s261 = smul.u32 %s260, 96
                %s262 = smul.u32 %s260, 96
                %s263 = scalar_lea.vmem %s142, %s261
                %s264 = scalar_lea.vmem %s134, %s262 [#allocation2]
              $region45: #{tpu_custom_call.1} parent=39 // loop_footer
                %s156 = sadd.s32 %s154, 1
              $region46: #{tpu_custom_call.1} parent=39 // loop_footer_branch
                %153 = sbr.rel target = $region42
              $region47: #{tpu_custom_call.1} parent=39 // loop_exit
                _
              %s265 = sdiv.u32.pop %s138, 24
              %s266 = srem.u32.pop %s138, 24
              %s267 = smul.u32 %s265, 24
              %s268 = smul.u32 4, %s267
              %s269 = scalar_lea.vmem %s142, %s268
              %s270 = smul.u32 4, %s267
              %s271 = scalar_lea.vmem %s134, %s270 [#allocation2]
              // While loop
              $region48: #{tpu_custom_call.1} parent=39 // loop_pre_header
                _
              $region49: #{tpu_custom_call.1} parent=39 // loop_header
                %s273 = sphi 0, %s275
                %p274 = scmp.ge.s32.totalorder %s273, %s266
                %s278 = sphi 0, %s287
                %s279 = sphi %s269, %s290
                %s280 = sphi %s271, %s291
              $region50: #{tpu_custom_call.1} parent=39 // loop_header_branch
                %277 = sbr.rel (%p274) target = $region54
              $region51: #{tpu_custom_call.1} parent=39 // loop_body
                %v281 = vld [vmem:[%s279] sm:$0xf]
                %282 = vst [vmem:[%s280] sm:$0xf] %v281
                %v283 = vld [vmem:[%s279 + $0x64] sm:$0xf]
                %284 = vst [vmem:[%s280 + $0x60] sm:$0xf] %v283
                %s285 = sadd.s32 1, %s278
                %p286 = scmp.ge.s32.totalorder %s285, %s266
                %s287 = scalar_select %p286, 0, %s285
                %s288 = smul.u32 %s287, 4
                %s289 = smul.u32 %s287, 4
                %s290 = scalar_lea.vmem %s269, %s288
                %s291 = scalar_lea.vmem %s271, %s289 [#allocation2]
              $region52: #{tpu_custom_call.1} parent=39 // loop_footer
                %s275 = sadd.s32 %s273, 1
              $region53: #{tpu_custom_call.1} parent=39 // loop_footer_branch
                %272 = sbr.rel target = $region49
              $region54: #{tpu_custom_call.1} parent=39 // loop_exit
                _
            $region40: #{tpu_custom_call.1} parent=31 // pred_fallthru
              _
          $region32: #{tpu_custom_call.1} parent=27 // pred_fallthru
            _
          %477 = vnop
        $region28: #{tpu_custom_call.1} parent=23 // pred_fallthru
          _
      $region24: #{tpu_custom_call.1} parent=5 // pred_fallthru
        _
      %p478 = scmp.le.s32.totalorder 1, %s9
      %p479 = scmp.lt.s32.totalorder %s9, 3
      %p480 = pnand %p478, %p479
      %p481 = pneg %p480
      // Predicated region
      $region87: #{tpu_custom_call.1} parent=5 // pred_check
        _
      $region88: #{tpu_custom_call.1} parent=5 // pred_check_branch
        %483 = sbr.rel (%p480) target = $region90
      $region89: #{tpu_custom_call.1} parent=5 // pred_region
        %s484 = ssub.s32 %s9, 1
        %s485 = sand.u32 %s22, 1
        %s486 = sand.u32 %s22, 1
        %s487 = smul.addr %s486, 192
        %s488 = scalar_lea.vmem [#allocation2], %s487
        // Predicated region
        $region91: #{tpu_custom_call.1} parent=89 // pred_check
          %p489 = pneg %p35
        $region92: #{tpu_custom_call.1} parent=89 // pred_check_branch
          %491 = sbr.rel (%p489) target = $region94
        $region93: #{tpu_custom_call.1} parent=89 // pred_region
          _
        $region94: #{tpu_custom_call.1} parent=89 // pred_fallthru
          _
        %s492 = sand.u32 %s22, 1
        %s493 = sand.u32 %s22, 1
        %s494 = smul.addr %s493, 192
        %s495 = scalar_lea.vmem [#allocation2], %s494
        %p496 = pneg %p35
        %p497 = pneg %p32
        %p498 = pneg %p56
        %p499 = pneg %p53
        %p500 = pneg %p77
        %p501 = pneg %p74
        %p502 = pneg %p103
        %p503 = pneg %p100
        %s504 = sand.u32 %s90, 1
        %s505 = sand.u32 %s90, 1
        %s506 = smul.addr %s505, 192
        %s507 = scalar_lea.vmem [#allocation3], %s506
        %s508 = smul.u32 24, %s14
        %s509 = ssub.s32 25, %s508
        %p510 = scmp.lt.s32.totalorder %s509, 24
        %s511 = scalar_select %p510, %s509, 24
        %s512 = smul.u32 128, %s511
        %s513 = smul.u32 24, %s14
        %s514 = ssub.s32 25, %s513
        %p515 = scmp.lt.s32.totalorder %s514, 24
        %s516 = scalar_select %p515, %s514, 24
        %s517 = smul.u32 128, %s516
        %v519 = vld [vmem:[%s488] sm:$0xf]
        %v520 = vld [vmem:[%s488 + $0x4] sm:$0xf]
        %v521 = vld [vmem:[%s488 + $0x8] sm:$0xf]
        %v522 = vld [vmem:[%s488 + $0xc] sm:$0xf]
        %v523 = vld [vmem:[%s488 + $0x10] sm:$0xf]
        %v524 = vld [vmem:[%s488 + $0x14] sm:$0xf]
        %v525 = vld [vmem:[%s488 + $0x18] sm:$0xf]
        %v526 = vld [vmem:[%s488 + $0x1c] sm:$0xf]
        %v527 = vld [vmem:[%s488 + $0x20] sm:$0xf]
        %v528 = vld [vmem:[%s488 + $0x24] sm:$0xf]
        %v529 = vld [vmem:[%s488 + $0x28] sm:$0xf]
        %v530 = vld [vmem:[%s488 + $0x2c] sm:$0xf]
        %v531 = vld [vmem:[%s488 + $0x30] sm:$0xf]
        %v532 = vld [vmem:[%s488 + $0x34] sm:$0xf]
        %v533 = vld [vmem:[%s488 + $0x38] sm:$0xf]
        %v534 = vld [vmem:[%s488 + $0x3c] sm:$0xf]
        %v535 = vld [vmem:[%s488 + $0x40] sm:$0xf]
        %v536 = vld [vmem:[%s488 + $0x44] sm:$0xf]
        %v537 = vld [vmem:[%s488 + $0x48] sm:$0xf]
        %v538 = vld [vmem:[%s488 + $0x4c] sm:$0xf]
        %v539 = vld [vmem:[%s488 + $0x50] sm:$0xf]
        %v540 = vld [vmem:[%s488 + $0x54] sm:$0xf]
        %v541 = vld [vmem:[%s488 + $0x58] sm:$0xf]
        %v542 = vld [vmem:[%s488 + $0x5c] sm:$0xf]
        %v543 = vld [vmem:[%s488 + $0x60] sm:$0xf]
        %v544 = vld [vmem:[%s488 + $0x64] sm:$0xf]
        %v545 = vld [vmem:[%s488 + $0x68] sm:$0xf]
        %v546 = vld [vmem:[%s488 + $0x6c] sm:$0xf]
        %v547 = vld [vmem:[%s488 + $0x70] sm:$0xf]
        %v548 = vld [vmem:[%s488 + $0x74] sm:$0xf]
        %v549 = vld [vmem:[%s488 + $0x78] sm:$0xf]
        %v550 = vld [vmem:[%s488 + $0x7c] sm:$0xf]
        %v551 = vld [vmem:[%s488 + $0x80] sm:$0xf]
        %v552 = vld [vmem:[%s488 + $0x84] sm:$0xf]
        %v553 = vld [vmem:[%s488 + $0x88] sm:$0xf]
        %v554 = vld [vmem:[%s488 + $0x8c] sm:$0xf]
        %v555 = vld [vmem:[%s488 + $0x90] sm:$0xf]
        %v556 = vld [vmem:[%s488 + $0x94] sm:$0xf]
        %v557 = vld [vmem:[%s488 + $0x98] sm:$0xf]
        %v558 = vld [vmem:[%s488 + $0x9c] sm:$0xf]
        %v559 = vld [vmem:[%s488 + $0xa0] sm:$0xf]
        %v560 = vld [vmem:[%s488 + $0xa4] sm:$0xf]
        %v561 = vld [vmem:[%s488 + $0xa8] sm:$0xf]
        %v562 = vld [vmem:[%s488 + $0xac] sm:$0xf]
        %v563 = vld [vmem:[%s488 + $0xb0] sm:$0xf]
        %v564 = vld [vmem:[%s488 + $0xb4] sm:$0xf]
        %v565 = vld [vmem:[%s488 + $0xb8] sm:$0xf]
        %v566 = vld [vmem:[%s488 + $0xbc] sm:$0xf]
        %v567 = vld [vmem:[%s1] sm:$0xf]
        %v568 = vld [vmem:[%s1 + $0x4] sm:$0xf]
        %v569 = vld [vmem:[%s1 + $0x8] sm:$0xf]
        %v570 = vld [vmem:[%s1 + $0xc] sm:$0xf]
        %v571 = vld [vmem:[%s1 + $0x10] sm:$0x3]
        %v572 = vld [vmem:[%s2] sm:$0x1]
        %v574 = vlaneseq
        %v575 = vshrl.u32 %v574, 7
        %v576 = vsub.s32 0, %v575
        %v577 = vrot.slane %v572, %v576
        %v627 = vunpack.c.l.b16 %v519
        %v628 = vunpack.c.l.b16 %v520
        %v629 = vunpack.c.l.b16 %v521
        %v630 = vunpack.c.l.b16 %v522
        %v631 = vunpack.c.l.b16 %v523
        %v632 = vunpack.c.l.b16 %v524
        %v633 = vunpack.c.l.b16 %v525
        %v634 = vunpack.c.l.b16 %v526
        %v635 = vunpack.c.l.b16 %v527
        %v636 = vunpack.c.l.b16 %v528
        %v637 = vunpack.c.l.b16 %v529
        %v638 = vunpack.c.l.b16 %v530
        %v639 = vunpack.c.l.b16 %v531
        %v640 = vunpack.c.l.b16 %v532
        %v641 = vunpack.c.l.b16 %v533
        %v642 = vunpack.c.l.b16 %v534
        %v643 = vunpack.c.l.b16 %v535
        %v644 = vunpack.c.l.b16 %v536
        %v645 = vunpack.c.l.b16 %v537
        %v646 = vunpack.c.l.b16 %v538
        %v647 = vunpack.c.l.b16 %v539
        %v648 = vunpack.c.l.b16 %v540
        %v649 = vunpack.c.l.b16 %v541
        %v650 = vunpack.c.l.b16 %v542
        %v651 = vunpack.c.l.b16 %v543
        %v652 = vunpack.c.l.b16 %v544
        %v653 = vunpack.c.l.b16 %v545
        %v654 = vunpack.c.l.b16 %v546
        %v655 = vunpack.c.l.b16 %v547
        %v656 = vunpack.c.l.b16 %v548
        %v657 = vunpack.c.l.b16 %v549
        %v658 = vunpack.c.l.b16 %v550
        %v659 = vunpack.c.l.b16 %v551
        %v660 = vunpack.c.l.b16 %v552
        %v661 = vunpack.c.l.b16 %v553
        %v662 = vunpack.c.l.b16 %v554
        %v663 = vunpack.c.l.b16 %v555
        %v664 = vunpack.c.l.b16 %v556
        %v665 = vunpack.c.l.b16 %v557
        %v666 = vunpack.c.l.b16 %v558
        %v667 = vunpack.c.l.b16 %v559
        %v668 = vunpack.c.l.b16 %v560
        %v669 = vunpack.c.l.b16 %v561
        %v670 = vunpack.c.l.b16 %v562
        %v671 = vunpack.c.l.b16 %v563
        %v672 = vunpack.c.l.b16 %v564
        %v673 = vunpack.c.l.b16 %v565
        %v674 = vunpack.c.l.b16 %v566
        %v675 = vpack.c.b16 %v628, %v627
        %v676 = vpack.c.b16 %v630, %v629
        %v677 = vpack.c.b16 %v632, %v631
        %v678 = vpack.c.b16 %v634, %v633
        %v679 = vpack.c.b16 %v636, %v635
        %v680 = vpack.c.b16 %v638, %v637
        %v681 = vpack.c.b16 %v640, %v639
        %v682 = vpack.c.b16 %v642, %v641
        %v683 = vpack.c.b16 %v644, %v643
        %v684 = vpack.c.b16 %v646, %v645
        %v685 = vpack.c.b16 %v648, %v647
        %v686 = vpack.c.b16 %v650, %v649
        %v687 = vpack.c.b16 %v652, %v651
        %v688 = vpack.c.b16 %v654, %v653
        %v689 = vpack.c.b16 %v656, %v655
        %v690 = vpack.c.b16 %v658, %v657
        %v691 = vpack.c.b16 %v660, %v659
        %v692 = vpack.c.b16 %v662, %v661
        %v693 = vpack.c.b16 %v664, %v663
        %v694 = vpack.c.b16 %v666, %v665
        %v695 = vpack.c.b16 %v668, %v667
        %v696 = vpack.c.b16 %v670, %v669
        %v697 = vpack.c.b16 %v672, %v671
        %v698 = vpack.c.b16 %v674, %v673
        %v704 = vunpack.c.l.b16 %v567
        %v705 = vunpack.c.l.b16 %v568
        %v706 = vunpack.c.l.b16 %v569
        %v707 = vunpack.c.l.b16 %v570
        %v708 = vunpack.c.l.b16 %v571
        %v709 = vpack.c.b16 %v705, %v704
        %v710 = vpack.c.b16 %v707, %v706
        %v711 = vpack.c.b16 %v708, %v708
        %vm714 = vcmask 293888
        %v716 = vsel %vm714, %v675, 0
        %v719 = vsel %vm714, %v676, 0
        %v722 = vsel %vm714, %v677, 0
        %v725 = vsel %vm714, %v678, 0
        %v728 = vsel %vm714, %v679, 0
        %v731 = vsel %vm714, %v680, 0
        %v734 = vsel %vm714, %v681, 0
        %v737 = vsel %vm714, %v682, 0
        %v740 = vsel %vm714, %v683, 0
        %v743 = vsel %vm714, %v684, 0
        %v746 = vsel %vm714, %v685, 0
        %v749 = vsel %vm714, %v686, 0
        %v752 = vsel %vm714, %v687, 0
        %v755 = vsel %vm714, %v688, 0
        %v758 = vsel %vm714, %v689, 0
        %v761 = vsel %vm714, %v690, 0
        %v764 = vsel %vm714, %v691, 0
        %v767 = vsel %vm714, %v692, 0
        %v770 = vsel %vm714, %v693, 0
        %v773 = vsel %vm714, %v694, 0
        %v776 = vsel %vm714, %v695, 0
        %v779 = vsel %vm714, %v696, 0
        %v782 = vsel %vm714, %v697, 0
        %v785 = vsel %vm714, %v698, 0
        %vm787 = vcmask 1041408
        %v789 = vsel %vm787, %v711, 0
        %791 = vmatprep.subr.bf16.mxu0 0
        %792 = vmatpush1.bf16.msra.mxu0 %v709
        %793 = vmatprep.subr.bf16.mxu0 0
        %794 = vmatpush1.bf16.msra.mxu0 %v710
        %795 = vmatprep.subr.bf16.mxu0 0
        %796 = vmatpush1.bf16.msra.mxu0 %v789
        %797 = vmatprep.subr.bf16.mxu0 0
        %798 = vmatpush1.bf16.msra.mxu0 0
        %799 = vmatprep.subr.bf16.mxu0 0
        %800 = vmatpush1.bf16.msra.mxu0 0
        %801 = vmatprep.subr.bf16.mxu0 0
        %802 = vmatpush1.bf16.msra.mxu0 0
        %803 = vmatprep.subr.bf16.mxu0 0
        %804 = vmatpush1.bf16.msra.mxu0 0
        %805 = vmatprep.subr.bf16.mxu0 0
        %806 = vmatpush1.bf16.msra.mxu0 0
        %807 = vmatprep.subr.bf16.mxu0 0
        %808 = vmatpush1.bf16.msra.mxu0 0
        %809 = vmatprep.subr.bf16.mxu0 0
        %810 = vmatpush1.bf16.msra.mxu0 0
        %811 = vmatprep.subr.bf16.mxu0 0
        %812 = vmatpush1.bf16.msra.mxu0 0
        %813 = vmatprep.subr.bf16.mxu0 0
        %814 = vmatpush1.bf16.msra.mxu0 0
        %815 = vmatprep.subr.bf16.mxu0 0
        %816 = vmatpush1.bf16.msra.mxu0 0
        %817 = vmatprep.subr.bf16.mxu0 0
        %818 = vmatpush1.bf16.msra.mxu0 0
        %819 = vmatprep.subr.bf16.mxu0 0
        %820 = vmatpush1.bf16.msra.mxu0 0
        %821 = vmatprep.subr.bf16.mxu0 0
        %822 = vmatpush1.bf16.msra.mxu0 0
        %823 = vmatprep.mubr.bf16.mxu0 0
        %824 = vmatmul.mubr.bf16.gmra.mrb[0].mxu0 %v716
        %v825 = vpop.f32.mrb[0].mxu0
        %v826 = vadd.f32 %v577, %v825
        %v827 = vpop.f32.mrb[0].mxu0
        %v828 = vpop.f32.mrb[0].mxu0
        %v829 = vadd.f32 %v577, %v828
        %v830 = vpop.f32.mrb[0].mxu0
        %831 = vmatprep.mubr.bf16.mxu0 0
        %832 = vmatmul.mubr.bf16.gmra.mrb[0].mxu0 %v719
        %v833 = vpop.f32.mrb[0].mxu0
        %v834 = vadd.f32 %v577, %v833
        %v835 = vpop.f32.mrb[0].mxu0
        %v836 = vpop.f32.mrb[0].mxu0
        %v837 = vadd.f32 %v577, %v836
        %v838 = vpop.f32.mrb[0].mxu0
        %839 = vmatprep.mubr.bf16.mxu0 0
        %840 = vmatmul.mubr.bf16.gmra.mrb[0].mxu0 %v722
        %v841 = vpop.f32.mrb[0].mxu0
        %v842 = vadd.f32 %v577, %v841
        %v843 = vpop.f32.mrb[0].mxu0
        %v844 = vpop.f32.mrb[0].mxu0
        %v845 = vadd.f32 %v577, %v844
        %v846 = vpop.f32.mrb[0].mxu0
        %847 = vmatprep.mubr.bf16.mxu0 0
        %848 = vmatmul.mubr.bf16.gmra.mrb[0].mxu0 %v725
        %v849 = vpop.f32.mrb[0].mxu0
        %v850 = vadd.f32 %v577, %v849
        %v851 = vpop.f32.mrb[0].mxu0
        %v852 = vpop.f32.mrb[0].mxu0
        %v853 = vadd.f32 %v577, %v852
        %v854 = vpop.f32.mrb[0].mxu0
        %855 = vmatprep.mubr.bf16.mxu0 0
        %856 = vmatmul.mubr.bf16.gmra.mrb[0].mxu0 %v728
        %v857 = vpop.f32.mrb[0].mxu0
        %v858 = vadd.f32 %v577, %v857
        %v859 = vpop.f32.mrb[0].mxu0
        %v860 = vpop.f32.mrb[0].mxu0
        %v861 = vadd.f32 %v577, %v860
        %v862 = vpop.f32.mrb[0].mxu0
        %863 = vmatprep.mubr.bf16.mxu0 0
        %864 = vmatmul.mubr.bf16.gmra.mrb[0].mxu0 %v731
        %v865 = vpop.f32.mrb[0].mxu0
        %v866 = vadd.f32 %v577, %v865
        %v867 = vpop.f32.mrb[0].mxu0
        %v868 = vpop.f32.mrb[0].mxu0
        %v869 = vadd.f32 %v577, %v868
        %v870 = vpop.f32.mrb[0].mxu0
        %871 = vmatprep.mubr.bf16.mxu0 0
        %872 = vmatmul.mubr.bf16.gmra.mrb[0].mxu0 %v734
        %v873 = vpop.f32.mrb[0].mxu0
        %v874 = vadd.f32 %v577, %v873
        %v875 = vpop.f32.mrb[0].mxu0
        %v876 = vpop.f32.mrb[0].mxu0
        %v877 = vadd.f32 %v577, %v876
        %v878 = vpop.f32.mrb[0].mxu0
        %879 = vmatprep.mubr.bf16.mxu0 0
        %880 = vmatmul.mubr.bf16.gmra.mrb[0].mxu0 %v737
        %v881 = vpop.f32.mrb[0].mxu0
        %v882 = vadd.f32 %v577, %v881
        %v883 = vpop.f32.mrb[0].mxu0
        %v884 = vpop.f32.mrb[0].mxu0
        %v885 = vadd.f32 %v577, %v884
        %v886 = vpop.f32.mrb[0].mxu0
        %887 = vmatprep.mubr.bf16.mxu0 0
        %888 = vmatmul.mubr.bf16.gmra.mrb[0].mxu0 %v740
        %v889 = vpop.f32.mrb[0].mxu0
        %v890 = vadd.f32 %v577, %v889
        %v891 = vpop.f32.mrb[0].mxu0
        %v892 = vpop.f32.mrb[0].mxu0
        %v893 = vadd.f32 %v577, %v892
        %v894 = vpop.f32.mrb[0].mxu0
        %895 = vmatprep.mubr.bf16.mxu0 0
        %896 = vmatmul.mubr.bf16.gmra.mrb[0].mxu0 %v743
        %v897 = vpop.f32.mrb[0].mxu0
        %v898 = vadd.f32 %v577, %v897
        %v899 = vpop.f32.mrb[0].mxu0
        %v900 = vpop.f32.mrb[0].mxu0
        %v901 = vadd.f32 %v577, %v900
        %v902 = vpop.f32.mrb[0].mxu0
        %903 = vmatprep.mubr.bf16.mxu0 0
        %904 = vmatmul.mubr.bf16.gmra.mrb[0].mxu0 %v746
        %v905 = vpop.f32.mrb[0].mxu0
        %v906 = vadd.f32 %v577, %v905
        %v907 = vpop.f32.mrb[0].mxu0
        %v908 = vpop.f32.mrb[0].mxu0
        %v909 = vadd.f32 %v577, %v908
        %v910 = vpop.f32.mrb[0].mxu0
        %911 = vmatprep.mubr.bf16.mxu0 0
        %912 = vmatmul.mubr.bf16.gmra.mrb[0].mxu0 %v749
        %v913 = vpop.f32.mrb[0].mxu0
        %v914 = vadd.f32 %v577, %v913
        %v915 = vpop.f32.mrb[0].mxu0
        %v916 = vpop.f32.mrb[0].mxu0
        %v917 = vadd.f32 %v577, %v916
        %v918 = vpop.f32.mrb[0].mxu0
        %919 = vmatprep.mubr.bf16.mxu0 0
        %920 = vmatmul.mubr.bf16.gmra.mrb[0].mxu0 %v752
        %v921 = vpop.f32.mrb[0].mxu0
        %v922 = vadd.f32 %v577, %v921
        %v923 = vpop.f32.mrb[0].mxu0
        %v924 = vpop.f32.mrb[0].mxu0
        %v925 = vadd.f32 %v577, %v924
        %v926 = vpop.f32.mrb[0].mxu0
        %927 = vmatprep.mubr.bf16.mxu0 0
        %928 = vmatmul.mubr.bf16.gmra.mrb[0].mxu0 %v755
        %v929 = vpop.f32.mrb[0].mxu0
        %v930 = vadd.f32 %v577, %v929
        %v931 = vpop.f32.mrb[0].mxu0
        %v932 = vpop.f32.mrb[0].mxu0
        %v933 = vadd.f32 %v577, %v932
        %v934 = vpop.f32.mrb[0].mxu0
        %935 = vmatprep.mubr.bf16.mxu0 0
        %936 = vmatmul.mubr.bf16.gmra.mrb[0].mxu0 %v758
        %v937 = vpop.f32.mrb[0].mxu0
        %v938 = vadd.f32 %v577, %v937
        %v939 = vpop.f32.mrb[0].mxu0
        %v940 = vpop.f32.mrb[0].mxu0
        %v941 = vadd.f32 %v577, %v940
        %v942 = vpop.f32.mrb[0].mxu0
        %943 = vmatprep.mubr.bf16.mxu0 0
        %944 = vmatmul.mubr.bf16.gmra.mrb[0].mxu0 %v761
        %v945 = vpop.f32.mrb[0].mxu0
        %v946 = vadd.f32 %v577, %v945
        %v947 = vpop.f32.mrb[0].mxu0
        %v948 = vpop.f32.mrb[0].mxu0
        %v949 = vadd.f32 %v577, %v948
        %v950 = vpop.f32.mrb[0].mxu0
        %951 = vmatprep.mubr.bf16.mxu0 0
        %952 = vmatmul.mubr.bf16.gmra.mrb[0].mxu0 %v764
        %v953 = vpop.f32.mrb[0].mxu0
        %v954 = vadd.f32 %v577, %v953
        %v955 = vpop.f32.mrb[0].mxu0
        %v956 = vpop.f32.mrb[0].mxu0
        %v957 = vadd.f32 %v577, %v956
        %v958 = vpop.f32.mrb[0].mxu0
        %959 = vmatprep.mubr.bf16.mxu0 0
        %960 = vmatmul.mubr.bf16.gmra.mrb[0].mxu0 %v767
        %v961 = vpop.f32.mrb[0].mxu0
        %v962 = vadd.f32 %v577, %v961
        %v963 = vpop.f32.mrb[0].mxu0
        %v964 = vpop.f32.mrb[0].mxu0
        %v965 = vadd.f32 %v577, %v964
        %v966 = vpop.f32.mrb[0].mxu0
        %967 = vmatprep.mubr.bf16.mxu0 0
        %968 = vmatmul.mubr.bf16.gmra.mrb[0].mxu0 %v770
        %v969 = vpop.f32.mrb[0].mxu0
        %v970 = vadd.f32 %v577, %v969
        %v971 = vpop.f32.mrb[0].mxu0
        %v972 = vpop.f32.mrb[0].mxu0
        %v973 = vadd.f32 %v577, %v972
        %v974 = vpop.f32.mrb[0].mxu0
        %975 = vmatprep.mubr.bf16.mxu0 0
        %976 = vmatmul.mubr.bf16.gmra.mrb[0].mxu0 %v773
        %v977 = vpop.f32.mrb[0].mxu0
        %v978 = vadd.f32 %v577, %v977
        %v979 = vpop.f32.mrb[0].mxu0
        %v980 = vpop.f32.mrb[0].mxu0
        %v981 = vadd.f32 %v577, %v980
        %v982 = vpop.f32.mrb[0].mxu0
        %983 = vmatprep.mubr.bf16.mxu0 0
        %984 = vmatmul.mubr.bf16.gmra.mrb[0].mxu0 %v776
        %v985 = vpop.f32.mrb[0].mxu0
        %v986 = vadd.f32 %v577, %v985
        %v987 = vpop.f32.mrb[0].mxu0
        %v988 = vpop.f32.mrb[0].mxu0
        %v989 = vadd.f32 %v577, %v988
        %v990 = vpop.f32.mrb[0].mxu0
        %991 = vmatprep.mubr.bf16.mxu0 0
        %992 = vmatmul.mubr.bf16.gmra.mrb[0].mxu0 %v779
        %v993 = vpop.f32.mrb[0].mxu0
        %v994 = vadd.f32 %v577, %v993
        %v995 = vpop.f32.mrb[0].mxu0
        %v996 = vpop.f32.mrb[0].mxu0
        %v997 = vadd.f32 %v577, %v996
        %v998 = vpop.f32.mrb[0].mxu0
        %999 = vmatprep.mubr.bf16.mxu0 0
        %1000 = vmatmul.mubr.bf16.gmra.mrb[0].mxu0 %v782
        %v1001 = vpop.f32.mrb[0].mxu0
        %v1002 = vadd.f32 %v577, %v1001
        %v1003 = vpop.f32.mrb[0].mxu0
        %v1004 = vpop.f32.mrb[0].mxu0
        %v1005 = vadd.f32 %v577, %v1004
        %v1006 = vpop.f32.mrb[0].mxu0
        %1007 = vmatprep.mubr.bf16.mxu0 0
        %1008 = vmatmul.mubr.bf16.gmra.mrb[0].mxu0 %v785
        %v1009 = vpop.f32.mrb[0].mxu0
        %v1010 = vadd.f32 %v577, %v1009
        %v1011 = vpop.f32.mrb[0].mxu0
        %v1012 = vpop.f32.mrb[0].mxu0
        %v1013 = vadd.f32 %v577, %v1012
        %v1014 = vpop.f32.mrb[0].mxu0
        %1015 = vdwg.mxu0
        %vm1016 = vcmp.gt.f32.partialorder %v826, 0.0
        %vm1017 = vcmp.gt.f32.partialorder %v829, 0.0
        %vm1018 = vcmp.gt.f32.partialorder %v834, 0.0
        %vm1019 = vcmp.gt.f32.partialorder %v837, 0.0
        %vm1020 = vcmp.gt.f32.partialorder %v842, 0.0
        %vm1021 = vcmp.gt.f32.partialorder %v845, 0.0
        %vm1022 = vcmp.gt.f32.partialorder %v850, 0.0
        %vm1023 = vcmp.gt.f32.partialorder %v853, 0.0
        %vm1024 = vcmp.gt.f32.partialorder %v858, 0.0
        %vm1025 = vcmp.gt.f32.partialorder %v861, 0.0
        %vm1026 = vcmp.gt.f32.partialorder %v866, 0.0
        %vm1027 = vcmp.gt.f32.partialorder %v869, 0.0
        %vm1028 = vcmp.gt.f32.partialorder %v874, 0.0
        %vm1029 = vcmp.gt.f32.partialorder %v877, 0.0
        %vm1030 = vcmp.gt.f32.partialorder %v882, 0.0
        %vm1031 = vcmp.gt.f32.partialorder %v885, 0.0
        %vm1032 = vcmp.gt.f32.partialorder %v890, 0.0
        %vm1033 = vcmp.gt.f32.partialorder %v893, 0.0
        %vm1034 = vcmp.gt.f32.partialorder %v898, 0.0
        %vm1035 = vcmp.gt.f32.partialorder %v901, 0.0
        %vm1036 = vcmp.gt.f32.partialorder %v906, 0.0
        %vm1037 = vcmp.gt.f32.partialorder %v909, 0.0
        %vm1038 = vcmp.gt.f32.partialorder %v914, 0.0
        %vm1039 = vcmp.gt.f32.partialorder %v917, 0.0
        %vm1040 = vcmp.gt.f32.partialorder %v922, 0.0
        %vm1041 = vcmp.gt.f32.partialorder %v925, 0.0
        %vm1042 = vcmp.gt.f32.partialorder %v930, 0.0
        %vm1043 = vcmp.gt.f32.partialorder %v933, 0.0
        %vm1044 = vcmp.gt.f32.partialorder %v938, 0.0
        %vm1045 = vcmp.gt.f32.partialorder %v941, 0.0
        %vm1046 = vcmp.gt.f32.partialorder %v946, 0.0
        %vm1047 = vcmp.gt.f32.partialorder %v949, 0.0
        %vm1048 = vcmp.gt.f32.partialorder %v954, 0.0
        %vm1049 = vcmp.gt.f32.partialorder %v957, 0.0
        %vm1050 = vcmp.gt.f32.partialorder %v962, 0.0
        %vm1051 = vcmp.gt.f32.partialorder %v965, 0.0
        %vm1052 = vcmp.gt.f32.partialorder %v970, 0.0
        %vm1053 = vcmp.gt.f32.partialorder %v973, 0.0
        %vm1054 = vcmp.gt.f32.partialorder %v978, 0.0
        %vm1055 = vcmp.gt.f32.partialorder %v981, 0.0
        %vm1056 = vcmp.gt.f32.partialorder %v986, 0.0
        %vm1057 = vcmp.gt.f32.partialorder %v989, 0.0
        %vm1058 = vcmp.gt.f32.partialorder %v994, 0.0
        %vm1059 = vcmp.gt.f32.partialorder %v997, 0.0
        %vm1060 = vcmp.gt.f32.partialorder %v1002, 0.0
        %vm1061 = vcmp.gt.f32.partialorder %v1005, 0.0
        %vm1062 = vcmp.gt.f32.partialorder %v1010, 0.0
        %vm1063 = vcmp.gt.f32.partialorder %v1013, 0.0
        %v1064 = vmul.f32 %v826, 0.01
        %v1065 = vmul.f32 %v829, 0.01
        %v1066 = vmul.f32 %v834, 0.01
        %v1067 = vmul.f32 %v837, 0.01
        %v1068 = vmul.f32 %v842, 0.01
        %v1069 = vmul.f32 %v845, 0.01
        %v1070 = vmul.f32 %v850, 0.01
        %v1071 = vmul.f32 %v853, 0.01
        %v1072 = vmul.f32 %v858, 0.01
        %v1073 = vmul.f32 %v861, 0.01
        %v1074 = vmul.f32 %v866, 0.01
        %v1075 = vmul.f32 %v869, 0.01
        %v1076 = vmul.f32 %v874, 0.01
        %v1077 = vmul.f32 %v877, 0.01
        %v1078 = vmul.f32 %v882, 0.01
        %v1079 = vmul.f32 %v885, 0.01
        %v1080 = vmul.f32 %v890, 0.01
        %v1081 = vmul.f32 %v893, 0.01
        %v1082 = vmul.f32 %v898, 0.01
        %v1083 = vmul.f32 %v901, 0.01
        %v1084 = vmul.f32 %v906, 0.01
        %v1085 = vmul.f32 %v909, 0.01
        %v1086 = vmul.f32 %v914, 0.01
        %v1087 = vmul.f32 %v917, 0.01
        %v1088 = vmul.f32 %v922, 0.01
        %v1089 = vmul.f32 %v925, 0.01
        %v1090 = vmul.f32 %v930, 0.01
        %v1091 = vmul.f32 %v933, 0.01
        %v1092 = vmul.f32 %v938, 0.01
        %v1093 = vmul.f32 %v941, 0.01
        %v1094 = vmul.f32 %v946, 0.01
        %v1095 = vmul.f32 %v949, 0.01
        %v1096 = vmul.f32 %v954, 0.01
        %v1097 = vmul.f32 %v957, 0.01
        %v1098 = vmul.f32 %v962, 0.01
        %v1099 = vmul.f32 %v965, 0.01
        %v1100 = vmul.f32 %v970, 0.01
        %v1101 = vmul.f32 %v973, 0.01
        %v1102 = vmul.f32 %v978, 0.01
        %v1103 = vmul.f32 %v981, 0.01
        %v1104 = vmul.f32 %v986, 0.01
        %v1105 = vmul.f32 %v989, 0.01
        %v1106 = vmul.f32 %v994, 0.01
        %v1107 = vmul.f32 %v997, 0.01
        %v1108 = vmul.f32 %v1002, 0.01
        %v1109 = vmul.f32 %v1005, 0.01
        %v1110 = vmul.f32 %v1010, 0.01
        %v1111 = vmul.f32 %v1013, 0.01
        %v1112 = vsel %vm1016, %v826, %v1064
        %v1113 = vsel %vm1017, %v829, %v1065
        %v1114 = vsel %vm1018, %v834, %v1066
        %v1115 = vsel %vm1019, %v837, %v1067
        %v1116 = vsel %vm1020, %v842, %v1068
        %v1117 = vsel %vm1021, %v845, %v1069
        %v1118 = vsel %vm1022, %v850, %v1070
        %v1119 = vsel %vm1023, %v853, %v1071
        %v1120 = vsel %vm1024, %v858, %v1072
        %v1121 = vsel %vm1025, %v861, %v1073
        %v1122 = vsel %vm1026, %v866, %v1074
        %v1123 = vsel %vm1027, %v869, %v1075
        %v1124 = vsel %vm1028, %v874, %v1076
        %v1125 = vsel %vm1029, %v877, %v1077
        %v1126 = vsel %vm1030, %v882, %v1078
        %v1127 = vsel %vm1031, %v885, %v1079
        %v1128 = vsel %vm1032, %v890, %v1080
        %v1129 = vsel %vm1033, %v893, %v1081
        %v1130 = vsel %vm1034, %v898, %v1082
        %v1131 = vsel %vm1035, %v901, %v1083
        %v1132 = vsel %vm1036, %v906, %v1084
        %v1133 = vsel %vm1037, %v909, %v1085
        %v1134 = vsel %vm1038, %v914, %v1086
        %v1135 = vsel %vm1039, %v917, %v1087
        %v1136 = vsel %vm1040, %v922, %v1088
        %v1137 = vsel %vm1041, %v925, %v1089
        %v1138 = vsel %vm1042, %v930, %v1090
        %v1139 = vsel %vm1043, %v933, %v1091
        %v1140 = vsel %vm1044, %v938, %v1092
        %v1141 = vsel %vm1045, %v941, %v1093
        %v1142 = vsel %vm1046, %v946, %v1094
        %v1143 = vsel %vm1047, %v949, %v1095
        %v1144 = vsel %vm1048, %v954, %v1096
        %v1145 = vsel %vm1049, %v957, %v1097
        %v1146 = vsel %vm1050, %v962, %v1098
        %v1147 = vsel %vm1051, %v965, %v1099
        %v1148 = vsel %vm1052, %v970, %v1100
        %v1149 = vsel %vm1053, %v973, %v1101
        %v1150 = vsel %vm1054, %v978, %v1102
        %v1151 = vsel %vm1055, %v981, %v1103
        %v1152 = vsel %vm1056, %v986, %v1104
        %v1153 = vsel %vm1057, %v989, %v1105
        %v1154 = vsel %vm1058, %v994, %v1106
        %v1155 = vsel %vm1059, %v997, %v1107
        %v1156 = vsel %vm1060, %v1002, %v1108
        %v1157 = vsel %vm1061, %v1005, %v1109
        %v1158 = vsel %vm1062, %v1010, %v1110
        %v1159 = vsel %vm1063, %v1013, %v1111
        %vm1160 = vcmask 64512
        %v1161 = vsel %vm1160, %v1112, 0.0
        %v1162 = vsel %vm1160, %v1136, 0.0
        %v1163 = vadd.f32 %v1161, %v1162
        %v1164 = vsel %vm1160, %v1113, 0.0
        %v1165 = vsel %vm1160, %v1137, 0.0
        %v1166 = vadd.f32 %v1164, %v1165
        %v1167 = vsel %vm1160, %v1114, 0.0
        %v1168 = vsel %vm1160, %v1138, 0.0
        %v1169 = vadd.f32 %v1167, %v1168
        %v1170 = vsel %vm1160, %v1115, 0.0
        %v1171 = vsel %vm1160, %v1139, 0.0
        %v1172 = vadd.f32 %v1170, %v1171
        %v1173 = vsel %vm1160, %v1116, 0.0
        %v1174 = vsel %vm1160, %v1140, 0.0
        %v1175 = vadd.f32 %v1173, %v1174
        %v1176 = vsel %vm1160, %v1117, 0.0
        %v1177 = vsel %vm1160, %v1141, 0.0
        %v1178 = vadd.f32 %v1176, %v1177
        %v1179 = vsel %vm1160, %v1118, 0.0
        %v1180 = vsel %vm1160, %v1142, 0.0
        %v1181 = vadd.f32 %v1179, %v1180
        %v1182 = vsel %vm1160, %v1119, 0.0
        %v1183 = vsel %vm1160, %v1143, 0.0
        %v1184 = vadd.f32 %v1182, %v1183
        %v1185 = vsel %vm1160, %v1120, 0.0
        %v1186 = vsel %vm1160, %v1144, 0.0
        %v1187 = vadd.f32 %v1185, %v1186
        %v1188 = vsel %vm1160, %v1121, 0.0
        %v1189 = vsel %vm1160, %v1145, 0.0
        %v1190 = vadd.f32 %v1188, %v1189
        %v1191 = vsel %vm1160, %v1122, 0.0
        %v1192 = vsel %vm1160, %v1146, 0.0
        %v1193 = vadd.f32 %v1191, %v1192
        %v1194 = vsel %vm1160, %v1123, 0.0
        %v1195 = vsel %vm1160, %v1147, 0.0
        %v1196 = vadd.f32 %v1194, %v1195
        %v1197 = vsel %vm1160, %v1124, 0.0
        %v1198 = vsel %vm1160, %v1148, 0.0
        %v1199 = vadd.f32 %v1197, %v1198
        %v1200 = vsel %vm1160, %v1125, 0.0
        %v1201 = vsel %vm1160, %v1149, 0.0
        %v1202 = vadd.f32 %v1200, %v1201
        %v1203 = vsel %vm1160, %v1126, 0.0
        %v1204 = vsel %vm1160, %v1150, 0.0
        %v1205 = vadd.f32 %v1203, %v1204
        %v1206 = vsel %vm1160, %v1127, 0.0
        %v1207 = vsel %vm1160, %v1151, 0.0
        %v1208 = vadd.f32 %v1206, %v1207
        %v1209 = vsel %vm1160, %v1128, 0.0
        %v1210 = vsel %vm1160, %v1152, 0.0
        %v1211 = vadd.f32 %v1209, %v1210
        %v1212 = vsel %vm1160, %v1129, 0.0
        %v1213 = vsel %vm1160, %v1153, 0.0
        %v1214 = vadd.f32 %v1212, %v1213
        %v1215 = vsel %vm1160, %v1130, 0.0
        %v1216 = vsel %vm1160, %v1154, 0.0
        %v1217 = vadd.f32 %v1215, %v1216
        %v1218 = vsel %vm1160, %v1131, 0.0
        %v1219 = vsel %vm1160, %v1155, 0.0
        %v1220 = vadd.f32 %v1218, %v1219
        %v1221 = vsel %vm1160, %v1132, 0.0
        %v1222 = vsel %vm1160, %v1156, 0.0
        %v1223 = vadd.f32 %v1221, %v1222
        %v1224 = vsel %vm1160, %v1133, 0.0
        %v1225 = vsel %vm1160, %v1157, 0.0
        %v1226 = vadd.f32 %v1224, %v1225
        %v1227 = vsel %vm1160, %v1134, 0.0
        %v1228 = vsel %vm1160, %v1158, 0.0
        %v1229 = vadd.f32 %v1227, %v1228
        %v1230 = vsel %vm1160, %v1135, 0.0
        %v1231 = vsel %vm1160, %v1159, 0.0
        %v1232 = vadd.f32 %v1230, %v1231
        %v1233 = vrcp.pop 2.0
        %v1234 = vmul.f32 %v1163, %v1233
        %v1235 = vmul.f32 %v1166, %v1233
        %v1236 = vmul.f32 %v1169, %v1233
        %v1237 = vmul.f32 %v1172, %v1233
        %v1238 = vmul.f32 %v1175, %v1233
        %v1239 = vmul.f32 %v1178, %v1233
        %v1240 = vmul.f32 %v1181, %v1233
        %v1241 = vmul.f32 %v1184, %v1233
        %v1242 = vmul.f32 %v1187, %v1233
        %v1243 = vmul.f32 %v1190, %v1233
        %v1244 = vmul.f32 %v1193, %v1233
        %v1245 = vmul.f32 %v1196, %v1233
        %v1246 = vmul.f32 %v1199, %v1233
        %v1247 = vmul.f32 %v1202, %v1233
        %v1248 = vmul.f32 %v1205, %v1233
        %v1249 = vmul.f32 %v1208, %v1233
        %v1250 = vmul.f32 %v1211, %v1233
        %v1251 = vmul.f32 %v1214, %v1233
        %v1252 = vmul.f32 %v1217, %v1233
        %v1253 = vmul.f32 %v1220, %v1233
        %v1254 = vmul.f32 %v1223, %v1233
        %v1255 = vmul.f32 %v1226, %v1233
        %v1256 = vmul.f32 %v1229, %v1233
        %v1257 = vmul.f32 %v1232, %v1233
        %1258 = vst.msk [vmem:[%s507] sm:$0xff] %vm1160, %v1234
        %1259 = vst.msk [vmem:[%s507 + $0x8] sm:$0xff] %vm1160, %v1235
        %1260 = vst.msk [vmem:[%s507 + $0x10] sm:$0xff] %vm1160, %v1236
        %1261 = vst.msk [vmem:[%s507 + $0x18] sm:$0xff] %vm1160, %v1237
        %1262 = vst.msk [vmem:[%s507 + $0x20] sm:$0xff] %vm1160, %v1238
        %1263 = vst.msk [vmem:[%s507 + $0x28] sm:$0xff] %vm1160, %v1239
        %1264 = vst.msk [vmem:[%s507 + $0x30] sm:$0xff] %vm1160, %v1240
        %1265 = vst.msk [vmem:[%s507 + $0x38] sm:$0xff] %vm1160, %v1241
        %1266 = vst.msk [vmem:[%s507 + $0x40] sm:$0xff] %vm1160, %v1242
        %1267 = vst.msk [vmem:[%s507 + $0x48] sm:$0xff] %vm1160, %v1243
        %1268 = vst.msk [vmem:[%s507 + $0x50] sm:$0xff] %vm1160, %v1244
        %1269 = vst.msk [vmem:[%s507 + $0x58] sm:$0xff] %vm1160, %v1245
        %1270 = vst.msk [vmem:[%s507 + $0x60] sm:$0xff] %vm1160, %v1246
        %1271 = vst.msk [vmem:[%s507 + $0x68] sm:$0xff] %vm1160, %v1247
        %1272 = vst.msk [vmem:[%s507 + $0x70] sm:$0xff] %vm1160, %v1248
        %1273 = vst.msk [vmem:[%s507 + $0x78] sm:$0xff] %vm1160, %v1249
        %1274 = vst.msk [vmem:[%s507 + $0x80] sm:$0xff] %vm1160, %v1250
        %1275 = vst.msk [vmem:[%s507 + $0x88] sm:$0xff] %vm1160, %v1251
        %1276 = vst.msk [vmem:[%s507 + $0x90] sm:$0xff] %vm1160, %v1252
        %1277 = vst.msk [vmem:[%s507 + $0x98] sm:$0xff] %vm1160, %v1253
        %1278 = vst.msk [vmem:[%s507 + $0xa0] sm:$0xff] %vm1160, %v1254
        %1279 = vst.msk [vmem:[%s507 + $0xa8] sm:$0xff] %vm1160, %v1255
        %1280 = vst.msk [vmem:[%s507 + $0xb0] sm:$0xff] %vm1160, %v1256
        %1281 = vst.msk [vmem:[%s507 + $0xb8] sm:$0xff] %vm1160, %v1257
        %s1282 = sand.u32 %s90, 1
        %s1283 = sand.u32 %s90, 1
        %s1284 = smul.addr %s1283, 192
        %s1285 = scalar_lea.vmem [#allocation3], %s1284
        // Predicated region
        $region95: #{tpu_custom_call.1} parent=89 // pred_check
          %p1286 = pneg %p100
        $region96: #{tpu_custom_call.1} parent=89 // pred_check_branch
          %1288 = sbr.rel (%p1286) target = $region98
        $region97: #{tpu_custom_call.1} parent=89 // pred_region
          %s1289 = smul.u32 24, %s14
          %s1290 = ssub.s32 25, %s1289
          %p1291 = scmp.lt.s32.totalorder %s1290, 24
          %s1292 = scalar_select %p1291, %s1290, 24
          %s1293 = smul.u32 128, %s1292
          %p1294 = scmp.ne.s32.totalorder 0, %s1293
          %s1295 = smul.addr %s1289, 8
          %s1296 = scalar_lea.vmem %s3, %s1295
          // Predicated region
          $region99: #{tpu_custom_call.1} parent=97 // pred_check
            %p1297 = pneg %p1294
          $region100: #{tpu_custom_call.1} parent=97 // pred_check_branch
            %1299 = sbr.rel (%p1297) target = $region102
          $region101: #{tpu_custom_call.1} parent=97 // pred_region
            // Predicated region
            $region103: #{tpu_custom_call.1} parent=101 // pred_check
              _
            $region104: #{tpu_custom_call.1} parent=101 // pred_check_branch
              %1301 = sbr.rel (0) target = $region106
            $region105: #{tpu_custom_call.1} parent=101 // pred_region
              // Predicated region
              $region125: #{tpu_custom_call.1} parent=105 // pred_check
                _
              $region126: #{tpu_custom_call.1} parent=105 // pred_check_branch
                %1397 = sbr.rel (0) target = $region128
              $region127: #{tpu_custom_call.1} parent=105 // pred_region
                %s1398 = sdiv.u32.pop %s1292, 24
                %s1399 = srem.u32.pop %s1292, 24
                // While loop
                $region129: #{tpu_custom_call.1} parent=127 // loop_pre_header
                  _
                $region130: #{tpu_custom_call.1} parent=127 // loop_header
                  %s1401 = sphi 0, %s1403
                  %p1402 = scmp.ge.s32.totalorder %s1401, %s1398
                  %s1406 = sphi 0, %s1459
                  %s1407 = sphi %s1285, %s1462
                  %s1408 = sphi %s1296, %s1463
                $region131: #{tpu_custom_call.1} parent=127 // loop_header_branch
                  %1405 = sbr.rel (%p1402) target = $region135
                $region132: #{tpu_custom_call.1} parent=127 // loop_body
                  %v1409 = vld [vmem:[%s1407] sm:$0xff]
                  %1410 = vst [vmem:[%s1408] sm:$0xff] %v1409
                  %v1411 = vld [vmem:[%s1407 + $0x8] sm:$0xff]
                  %1412 = vst [vmem:[%s1408 + $0x8] sm:$0xff] %v1411
                  %v1413 = vld [vmem:[%s1407 + $0x10] sm:$0xff]
                  %1414 = vst [vmem:[%s1408 + $0x10] sm:$0xff] %v1413
                  %v1415 = vld [vmem:[%s1407 + $0x18] sm:$0xff]
                  %1416 = vst [vmem:[%s1408 + $0x18] sm:$0xff] %v1415
                  %v1417 = vld [vmem:[%s1407 + $0x20] sm:$0xff]
                  %1418 = vst [vmem:[%s1408 + $0x20] sm:$0xff] %v1417
                  %v1419 = vld [vmem:[%s1407 + $0x28] sm:$0xff]
                  %1420 = vst [vmem:[%s1408 + $0x28] sm:$0xff] %v1419
                  %v1421 = vld [vmem:[%s1407 + $0x30] sm:$0xff]
                  %1422 = vst [vmem:[%s1408 + $0x30] sm:$0xff] %v1421
                  %v1423 = vld [vmem:[%s1407 + $0x38] sm:$0xff]
                  %1424 = vst [vmem:[%s1408 + $0x38] sm:$0xff] %v1423
                  %v1425 = vld [vmem:[%s1407 + $0x40] sm:$0xff]
                  %1426 = vst [vmem:[%s1408 + $0x40] sm:$0xff] %v1425
                  %v1427 = vld [vmem:[%s1407 + $0x48] sm:$0xff]
                  %1428 = vst [vmem:[%s1408 + $0x48] sm:$0xff] %v1427
                  %v1429 = vld [vmem:[%s1407 + $0x50] sm:$0xff]
                  %1430 = vst [vmem:[%s1408 + $0x50] sm:$0xff] %v1429
                  %v1431 = vld [vmem:[%s1407 + $0x58] sm:$0xff]
                  %1432 = vst [vmem:[%s1408 + $0x58] sm:$0xff] %v1431
                  %v1433 = vld [vmem:[%s1407 + $0x60] sm:$0xff]
                  %1434 = vst [vmem:[%s1408 + $0x60] sm:$0xff] %v1433
                  %v1435 = vld [vmem:[%s1407 + $0x68] sm:$0xff]
                  %1436 = vst [vmem:[%s1408 + $0x68] sm:$0xff] %v1435
                  %v1437 = vld [vmem:[%s1407 + $0x70] sm:$0xff]
                  %1438 = vst [vmem:[%s1408 + $0x70] sm:$0xff] %v1437
                  %v1439 = vld [vmem:[%s1407 + $0x78] sm:$0xff]
                  %1440 = vst [vmem:[%s1408 + $0x78] sm:$0xff] %v1439
                  %v1441 = vld [vmem:[%s1407 + $0x80] sm:$0xff]
                  %1442 = vst [vmem:[%s1408 + $0x80] sm:$0xff] %v1441
                  %v1443 = vld [vmem:[%s1407 + $0x88] sm:$0xff]
                  %1444 = vst [vmem:[%s1408 + $0x88] sm:$0xff] %v1443
                  %v1445 = vld [vmem:[%s1407 + $0x90] sm:$0xff]
                  %1446 = vst [vmem:[%s1408 + $0x90] sm:$0xff] %v1445
                  %v1447 = vld [vmem:[%s1407 + $0x98] sm:$0xff]
                  %1448 = vst [vmem:[%s1408 + $0x98] sm:$0xff] %v1447
                  %v1449 = vld [vmem:[%s1407 + $0xa0] sm:$0xff]
                  %1450 = vst [vmem:[%s1408 + $0xa0] sm:$0xff] %v1449
                  %v1451 = vld [vmem:[%s1407 + $0xa8] sm:$0xff]
                  %1452 = vst [vmem:[%s1408 + $0xa8] sm:$0xff] %v1451
                  %v1453 = vld [vmem:[%s1407 + $0xb0] sm:$0xff]
                  %1454 = vst [vmem:[%s1408 + $0xb0] sm:$0xff] %v1453
                  %v1455 = vld [vmem:[%s1407 + $0xb8] sm:$0xff]
                  %1456 = vst [vmem:[%s1408 + $0xb8] sm:$0xff] %v1455
                  %s1457 = sadd.s32 1, %s1406
                  %p1458 = scmp.ge.s32.totalorder %s1457, %s1398
                  %s1459 = scalar_select %p1458, 0, %s1457
                  %s1460 = smul.u32 %s1459, 192
                  %s1461 = smul.u32 %s1459, 192
                  %s1462 = scalar_lea.vmem %s1285, %s1460 [#allocation3]
                  %s1463 = scalar_lea.vmem %s1296, %s1461
                $region133: #{tpu_custom_call.1} parent=127 // loop_footer
                  %s1403 = sadd.s32 %s1401, 1
                $region134: #{tpu_custom_call.1} parent=127 // loop_footer_branch
                  %1400 = sbr.rel target = $region130
                $region135: #{tpu_custom_call.1} parent=127 // loop_exit
                  _
                %s1464 = sdiv.u32.pop %s1292, 24
                %s1465 = srem.u32.pop %s1292, 24
                %s1466 = smul.u32 %s1464, 24
                %s1467 = smul.u32 8, %s1466
                %s1468 = scalar_lea.vmem %s1285, %s1467 [#allocation3]
                %s1469 = smul.u32 8, %s1466
                %s1470 = scalar_lea.vmem %s1296, %s1469
                // While loop
                $region136: #{tpu_custom_call.1} parent=127 // loop_pre_header
                  _
                $region137: #{tpu_custom_call.1} parent=127 // loop_header
                  %s1472 = sphi 0, %s1474
                  %p1473 = scmp.ge.s32.totalorder %s1472, %s1465
                  %s1477 = sphi 0, %s1484
                  %s1478 = sphi %s1468, %s1487
                  %s1479 = sphi %s1470, %s1488
                $region138: #{tpu_custom_call.1} parent=127 // loop_header_branch
                  %1476 = sbr.rel (%p1473) target = $region142
                $region139: #{tpu_custom_call.1} parent=127 // loop_body
                  %v1480 = vld [vmem:[%s1478] sm:$0xff]
                  %1481 = vst [vmem:[%s1479] sm:$0xff] %v1480
                  %s1482 = sadd.s32 1, %s1477
                  %p1483 = scmp.ge.s32.totalorder %s1482, %s1465
                  %s1484 = scalar_select %p1483, 0, %s1482
                  %s1485 = smul.u32 %s1484, 8
                  %s1486 = smul.u32 %s1484, 8
                  %s1487 = scalar_lea.vmem %s1468, %s1485 [#allocation3]
                  %s1488 = scalar_lea.vmem %s1470, %s1486
                $region140: #{tpu_custom_call.1} parent=127 // loop_footer
                  %s1474 = sadd.s32 %s1472, 1
                $region141: #{tpu_custom_call.1} parent=127 // loop_footer_branch
                  %1471 = sbr.rel target = $region137
                $region142: #{tpu_custom_call.1} parent=127 // loop_exit
                  _
              $region128: #{tpu_custom_call.1} parent=105 // pred_fallthru
                _
              // Predicated region
              $region143: #{tpu_custom_call.1} parent=105 // pred_check
                _
              $region144: #{tpu_custom_call.1} parent=105 // pred_check_branch
                %1490 = sbr.rel target = $region146
              $region145: #{tpu_custom_call.1} parent=105 // pred_region
                _
              $region146: #{tpu_custom_call.1} parent=105 // pred_fallthru
                _
            $region106: #{tpu_custom_call.1} parent=101 // pred_fallthru
              _
            // Predicated region
            $region107: #{tpu_custom_call.1} parent=101 // pred_check
              _
            $region108: #{tpu_custom_call.1} parent=101 // pred_check_branch
              %1303 = sbr.rel target = $region110
            $region109: #{tpu_custom_call.1} parent=101 // pred_region
              %s1305 = sdiv.u32.pop %s1292, 24
              %s1306 = srem.u32.pop %s1292, 24
              // While loop
              $region111: #{tpu_custom_call.1} parent=109 // loop_pre_header
                _
              $region112: #{tpu_custom_call.1} parent=109 // loop_header
                %s1308 = sphi 0, %s1310
                %p1309 = scmp.ge.s32.totalorder %s1308, %s1305
                %s1313 = sphi 0, %s1366
                %s1314 = sphi %s1285, %s1369
                %s1315 = sphi %s1296, %s1370
              $region113: #{tpu_custom_call.1} parent=109 // loop_header_branch
                %1312 = sbr.rel (%p1309) target = $region117
              $region114: #{tpu_custom_call.1} parent=109 // loop_body
                %v1316 = vld [vmem:[%s1314] sm:$0xff]
                %1317 = vst [vmem:[%s1315] sm:$0xff] %v1316
                %v1318 = vld [vmem:[%s1314 + $0x8] sm:$0xff]
                %1319 = vst [vmem:[%s1315 + $0x8] sm:$0xff] %v1318
                %v1320 = vld [vmem:[%s1314 + $0x10] sm:$0xff]
                %1321 = vst [vmem:[%s1315 + $0x10] sm:$0xff] %v1320
                %v1322 = vld [vmem:[%s1314 + $0x18] sm:$0xff]
                %1323 = vst [vmem:[%s1315 + $0x18] sm:$0xff] %v1322
                %v1324 = vld [vmem:[%s1314 + $0x20] sm:$0xff]
                %1325 = vst [vmem:[%s1315 + $0x20] sm:$0xff] %v1324
                %v1326 = vld [vmem:[%s1314 + $0x28] sm:$0xff]
                %1327 = vst [vmem:[%s1315 + $0x28] sm:$0xff] %v1326
                %v1328 = vld [vmem:[%s1314 + $0x30] sm:$0xff]
                %1329 = vst [vmem:[%s1315 + $0x30] sm:$0xff] %v1328
                %v1330 = vld [vmem:[%s1314 + $0x38] sm:$0xff]
                %1331 = vst [vmem:[%s1315 + $0x38] sm:$0xff] %v1330
                %v1332 = vld [vmem:[%s1314 + $0x40] sm:$0xff]
                %1333 = vst [vmem:[%s1315 + $0x40] sm:$0xff] %v1332
                %v1334 = vld [vmem:[%s1314 + $0x48] sm:$0xff]
                %1335 = vst [vmem:[%s1315 + $0x48] sm:$0xff] %v1334
                %v1336 = vld [vmem:[%s1314 + $0x50] sm:$0xff]
                %1337 = vst [vmem:[%s1315 + $0x50] sm:$0xff] %v1336
                %v1338 = vld [vmem:[%s1314 + $0x58] sm:$0xff]
                %1339 = vst [vmem:[%s1315 + $0x58] sm:$0xff] %v1338
                %v1340 = vld [vmem:[%s1314 + $0x60] sm:$0xff]
                %1341 = vst [vmem:[%s1315 + $0x60] sm:$0xff] %v1340
                %v1342 = vld [vmem:[%s1314 + $0x68] sm:$0xff]
                %1343 = vst [vmem:[%s1315 + $0x68] sm:$0xff] %v1342
                %v1344 = vld [vmem:[%s1314 + $0x70] sm:$0xff]
                %1345 = vst [vmem:[%s1315 + $0x70] sm:$0xff] %v1344
                %v1346 = vld [vmem:[%s1314 + $0x78] sm:$0xff]
                %1347 = vst [vmem:[%s1315 + $0x78] sm:$0xff] %v1346
                %v1348 = vld [vmem:[%s1314 + $0x80] sm:$0xff]
                %1349 = vst [vmem:[%s1315 + $0x80] sm:$0xff] %v1348
                %v1350 = vld [vmem:[%s1314 + $0x88] sm:$0xff]
                %1351 = vst [vmem:[%s1315 + $0x88] sm:$0xff] %v1350
                %v1352 = vld [vmem:[%s1314 + $0x90] sm:$0xff]
                %1353 = vst [vmem:[%s1315 + $0x90] sm:$0xff] %v1352
                %v1354 = vld [vmem:[%s1314 + $0x98] sm:$0xff]
                %1355 = vst [vmem:[%s1315 + $0x98] sm:$0xff] %v1354
                %v1356 = vld [vmem:[%s1314 + $0xa0] sm:$0xff]
                %1357 = vst [vmem:[%s1315 + $0xa0] sm:$0xff] %v1356
                %v1358 = vld [vmem:[%s1314 + $0xa8] sm:$0xff]
                %1359 = vst [vmem:[%s1315 + $0xa8] sm:$0xff] %v1358
                %v1360 = vld [vmem:[%s1314 + $0xb0] sm:$0xff]
                %1361 = vst [vmem:[%s1315 + $0xb0] sm:$0xff] %v1360
                %v1362 = vld [vmem:[%s1314 + $0xb8] sm:$0xff]
                %1363 = vst [vmem:[%s1315 + $0xb8] sm:$0xff] %v1362
                %s1364 = sadd.s32 1, %s1313
                %p1365 = scmp.ge.s32.totalorder %s1364, %s1305
                %s1366 = scalar_select %p1365, 0, %s1364
                %s1367 = smul.u32 %s1366, 192
                %s1368 = smul.u32 %s1366, 192
                %s1369 = scalar_lea.vmem %s1285, %s1367 [#allocation3]
                %s1370 = scalar_lea.vmem %s1296, %s1368
              $region115: #{tpu_custom_call.1} parent=109 // loop_footer
                %s1310 = sadd.s32 %s1308, 1
              $region116: #{tpu_custom_call.1} parent=109 // loop_footer_branch
                %1307 = sbr.rel target = $region112
              $region117: #{tpu_custom_call.1} parent=109 // loop_exit
                _
              %s1371 = sdiv.u32.pop %s1292, 24
              %s1372 = srem.u32.pop %s1292, 24
              %s1373 = smul.u32 %s1371, 24
              %s1374 = smul.u32 8, %s1373
              %s1375 = scalar_lea.vmem %s1285, %s1374 [#allocation3]
              %s1376 = smul.u32 8, %s1373
              %s1377 = scalar_lea.vmem %s1296, %s1376
              // While loop
              $region118: #{tpu_custom_call.1} parent=109 // loop_pre_header
                _
              $region119: #{tpu_custom_call.1} parent=109 // loop_header
                %s1379 = sphi 0, %s1381
                %p1380 = scmp.ge.s32.totalorder %s1379, %s1372
                %s1384 = sphi 0, %s1391
                %s1385 = sphi %s1375, %s1394
                %s1386 = sphi %s1377, %s1395
              $region120: #{tpu_custom_call.1} parent=109 // loop_header_branch
                %1383 = sbr.rel (%p1380) target = $region124
              $region121: #{tpu_custom_call.1} parent=109 // loop_body
                %v1387 = vld [vmem:[%s1385] sm:$0xff]
                %1388 = vst [vmem:[%s1386] sm:$0xff] %v1387
                %s1389 = sadd.s32 1, %s1384
                %p1390 = scmp.ge.s32.totalorder %s1389, %s1372
                %s1391 = scalar_select %p1390, 0, %s1389
                %s1392 = smul.u32 %s1391, 8
                %s1393 = smul.u32 %s1391, 8
                %s1394 = scalar_lea.vmem %s1375, %s1392 [#allocation3]
                %s1395 = scalar_lea.vmem %s1377, %s1393
              $region122: #{tpu_custom_call.1} parent=109 // loop_footer
                %s1381 = sadd.s32 %s1379, 1
              $region123: #{tpu_custom_call.1} parent=109 // loop_footer_branch
                %1378 = sbr.rel target = $region119
              $region124: #{tpu_custom_call.1} parent=109 // loop_exit
                _
            $region110: #{tpu_custom_call.1} parent=101 // pred_fallthru
              _
          $region102: #{tpu_custom_call.1} parent=97 // pred_fallthru
            _
          %1491 = vnop
        $region98: #{tpu_custom_call.1} parent=89 // pred_fallthru
          _
      $region90: #{tpu_custom_call.1} parent=5 // pred_fallthru
        _
      %p1492 = scmp.le.s32.totalorder 2, %s9
      // Predicated region
      $region147: #{tpu_custom_call.1} parent=5 // pred_check
        %p1493 = pneg %p1492
      $region148: #{tpu_custom_call.1} parent=5 // pred_check_branch
        %1495 = sbr.rel (%p1493) target = $region150
      $region149: #{tpu_custom_call.1} parent=5 // pred_region
        %s1496 = ssub.s32 %s9, 2
        // Predicated region
        $region151: #{tpu_custom_call.1} parent=149 // pred_check
          %p1497 = pneg %p106
        $region152: #{tpu_custom_call.1} parent=149 // pred_check_branch
          %1499 = sbr.rel (%p1497) target = $region154
        $region153: #{tpu_custom_call.1} parent=149 // pred_region
          %s1500 = sand.u32 %s91, 1
          %s1501 = sand.u32 %s91, 1
          %s1502 = smul.addr %s1501, 192
          %s1503 = scalar_lea.vmem [#allocation3], %s1502
        $region154: #{tpu_custom_call.1} parent=149 // pred_fallthru
          _
      $region150: #{tpu_custom_call.1} parent=5 // pred_fallthru
        _
    $region6: #{tpu_custom_call.1} parent=1 // loop_footer
      %s13 = sadd.s32 1, %s9
    $region7: #{tpu_custom_call.1} parent=1 // loop_footer_branch
      %8 = sbr.rel target = $region3
    $region8: #{tpu_custom_call.1} parent=1 // loop_exit
      _

</llo_original>
